<compile_context>
chip_gen: v5e
topology: v5e:2x2
jax: 0.10.0
libtpu: 0.0.40
codegen_flags: <defaults>
</compile_context>

<pallas_src>
import functools
import math

import jax
import jax.numpy as jnp
from jax import lax
from jax.experimental import pallas as pl
from jax.experimental.pallas import tpu as pltpu

VMEM_LIMIT_BYTES = 32 * 1024 * 1024   # safe scoped-VMEM budget on v5e / v6e / v7x


def _round_up(x, m):
    return (x + m - 1) // m * m


# --------------------------------------------------------------------------
# Pointwise (1x1x1) convolution kernels: row-tiled channel matmul (+ residual)
# --------------------------------------------------------------------------
def _conv1x1_kernel(x_ref, w_ref, b_ref, o_ref):
    x = x_ref[...].astype(jnp.bfloat16)                       # bf16 MXU operands
    acc = jnp.dot(x, w_ref[...], preferred_element_type=jnp.float32)
    o_ref[...] = (acc + b_ref[...]).astype(o_ref.dtype)


def _conv1x1_res_kernel(x_ref, w_ref, b_ref, r_ref, o_ref):
    x = x_ref[...].astype(jnp.bfloat16)
    acc = jnp.dot(x, w_ref[...], preferred_element_type=jnp.float32)
    o_ref[...] = (acc + b_ref[...] + r_ref[...].astype(jnp.float32)).astype(o_ref.dtype)


def conv1x1(x_flat, w, b, *, out_dtype, residual=None, tile_m=1024):
    """Row-tiled pointwise conv: (M, Cin) @ (Cin, Cout) + b [+ residual]."""
    M, cin = x_flat.shape
    cout = w.shape[1]
    tm = min(tile_m, _round_up(M, 8))          # multiple of 8 (sublane rule)
    mp = _round_up(M, tm)
    if mp != M:                                 # zero-pad tail rows (sliced off below)
        x_flat = jnp.pad(x_flat, ((0, mp - M), (0, 0)))
        if residual is not None:
            residual = jnp.pad(residual, ((0, mp - M), (0, 0)))

    in_specs = [
        pl.BlockSpec((tm, cin), lambda i: (i, 0)),
        pl.BlockSpec((cin, cout), lambda i: (0, 0)),
        pl.BlockSpec((1, cout), lambda i: (0, 0)),
    ]
    args = [x_flat, w, b]
    kernel = _conv1x1_kernel
    if residual is not None:
        in_specs.append(pl.BlockSpec((tm, cout), lambda i: (i, 0)))
        args.append(residual)
        kernel = _conv1x1_res_kernel

    out = pl.pallas_call(
        kernel,
        out_shape=jax.ShapeDtypeStruct((mp, cout), out_dtype),
        grid=(mp // tm,),
        in_specs=in_specs,
        out_specs=pl.BlockSpec((tm, cout), lambda i: (i, 0)),
        compiler_params=pltpu.CompilerParams(
            dimension_semantics=("parallel",),
            vmem_limit_bytes=VMEM_LIMIT_BYTES,
        ),
    )(*args)
    return out[:M] if mp != M else out


# --------------------------------------------------------------------------
# Non-local attention, tiled two-pass query-axis softmax
#   f = theta @ phi^T ; f_div_C = softmax(f, axis=QUERY) ; y = f_div_C @ g
# --------------------------------------------------------------------------
def _softmax_stats_kernel(theta_ref, phit_ref, mx_ref, inv_ref, m_sc, l_sc,
                          *, n_valid, tile_n, need_mask):
    """Pass 1: online column-max / column-sum over query (N) tiles."""
    k = pl.program_id(2)

    @pl.when(k == 0)
    def _():
        m_sc[...] = jnp.full_like(m_sc, -jnp.inf)
        l_sc[...] = jnp.zeros_like(l_sc)

    # scores for this (query-tile, key-tile): (tn, tns), f32 accumulation
    s = jnp.dot(theta_ref[...], phit_ref[...], preferred_element_type=jnp.float32)
    if need_mask:                               # mask zero-padded query rows
        rows = k * tile_n + lax.broadcasted_iota(jnp.int32, s.shape, 0)
        s = jnp.where(rows < n_valid, s, -jnp.inf)

    tile_max = jnp.max(s, axis=0, keepdims=True)            # (1, tns)
    m_new = jnp.maximum(m_sc[...], tile_max)
    alpha = jnp.exp(m_sc[...] - m_new)
    l_sc[...] = l_sc[...] * alpha + jnp.sum(jnp.exp(s - m_new), axis=0, keepdims=True)
    m_sc[...] = m_new

    @pl.when(k == pl.num_programs(2) - 1)
    def _():
        mx_ref[...] = m_sc[...]
        inv_ref[...] = pl.reciprocal(l_sc[...], approx=False)   # one recip per column


def _attn_apply_kernel(theta_ref, phit_ref, g_ref, mx_ref, inv_ref, y_ref, acc_ref):
    """Pass 2: y[n,:] += (exp(s - colmax) * invden) @ g, accumulated over key tiles."""
    j = pl.program_id(2)

    @pl.when(j == 0)
    def _():
        acc_ref[...] = jnp.zeros_like(acc_ref)

    s = jnp.dot(theta_ref[...], phit_ref[...], preferred_element_type=jnp.float32)
    p = jnp.exp(s - mx_ref[...]) * inv_ref[...]               # (tn, tns), f32
    acc_ref[...] += jnp.dot(p.astype(g_ref.dtype), g_ref[...],
                            preferred_element_type=jnp.float32)

    @pl.when(j == pl.num_programs(2) - 1)
    def _():
        y_ref[...] = acc_ref[...].astype(y_ref.dtype)


def nonlocal_attention(theta, phi_t, g, *, tile_n=256, tile_ns=512):
    """theta (B,N,Ci) bf16, phi_t (B,Ci,Ns) bf16, g (B,Ns,Ci) bf16 -> y (B,N,Ci) bf16."""
    B, N, Ci = theta.shape
    Ns = g.shape[1]

    tn = min(tile_n, _round_up(N, 8))
    np_ = _round_up(N, tn)
    if Ns < 128:
        tns, nsp = Ns, Ns                       # full-extent block (lane-rule exemption)
    else:
        tns = min(tile_ns, _round_up(Ns, 128))  # 128/256-aligned key tiles
        nsp = _round_up(Ns, tns)

    need_mask = np_ != N
    if need_mask:
        theta = jnp.pad(theta, ((0, 0), (0, np_ - N), (0, 0)))
    if nsp != Ns:
        # zero-padded key columns contribute exactly 0 (g rows are zero)
        phi_t = jnp.pad(phi_t, ((0, 0), (0, 0), (0, nsp - Ns)))
        g = jnp.pad(g, ((0, 0), (0, nsp - Ns), (0, 0)))

    cparams = pltpu.CompilerParams(
        dimension_semantics=("parallel", "parallel", "arbitrary"),
        vmem_limit_bytes=VMEM_LIMIT_BYTES,
    )

    # ---- pass 1: per-key-column max and reciprocal denominator ----
    colmax, invden = pl.pallas_call(
        functools.partial(_softmax_stats_kernel, n_valid=N, tile_n=tn,
                          need_mask=need_mask),
        out_shape=(jax.ShapeDtypeStruct((B, 1, nsp), jnp.float32),
                   jax.ShapeDtypeStruct((B, 1, nsp), jnp.float32)),
        grid=(B, nsp // tns, np_ // tn),
        in_specs=[
            pl.BlockSpec((None, tn, Ci), lambda b, j, k: (b, k, 0)),
            pl.BlockSpec((None, Ci, tns), lambda b, j, k: (b, 0, j)),
        ],
        out_specs=(
            pl.BlockSpec((None, 1, tns), lambda b, j, k: (b, 0, j)),
            pl.BlockSpec((None, 1, tns), lambda b, j, k: (b, 0, j)),
        ),
        scratch_shapes=[pltpu.VMEM((1, tns), jnp.float32),
                        pltpu.VMEM((1, tns), jnp.float32)],
        compiler_params=cparams,
    )(theta, phi_t)

    # ---- pass 2: y = normalized-scores @ g ----
    y = pl.pallas_call(
        _attn_apply_kernel,
        out_shape=jax.ShapeDtypeStruct((B, np_, Ci), jnp.bfloat16),
        grid=(B, np_ // tn, nsp // tns),
        in_specs=[
            pl.BlockSpec((None, tn, Ci), lambda b, i, j: (b, i, 0)),
            pl.BlockSpec((None, Ci, tns), lambda b, i, j: (b, 0, j)),
            pl.BlockSpec((None, tns, Ci), lambda b, i, j: (b, j, 0)),
            pl.BlockSpec((None, 1, tns), lambda b, i, j: (b, 0, j)),
            pl.BlockSpec((None, 1, tns), lambda b, i, j: (b, 0, j)),
        ],
        out_specs=pl.BlockSpec((None, tn, Ci), lambda b, i, j: (b, i, 0)),
        scratch_shapes=[pltpu.VMEM((tn, Ci), jnp.float32)],
        compiler_params=cparams,
    )(theta, phi_t, g, colmax, invden)

    return y[:, :N, :] if need_mask else y


# --------------------------------------------------------------------------
# Forward pass (glue in plain JAX: layout transforms + MaxPool3d((1,2,2)))
# --------------------------------------------------------------------------
def psgm_forward(x, mask_pred, params):
    """x, mask_pred: (B, C, T, H, W) float32 -> (B, C, T, H, W) float32."""
    B, C, T, H, W = x.shape
    Ci = params["theta_w"].shape[1]
    N = T * H * W

    x_cl = jnp.transpose(x, (0, 2, 3, 4, 1))             # (B, T, H, W, C)
    m_cl = jnp.transpose(mask_pred, (0, 2, 3, 4, 1))
    x_flat = x_cl.reshape(B * N, C)
    m_flat = m_cl.reshape(B * N, C)

    # fused g + phi pointwise conv: single HBM read of x, bf16 output.
    gp = conv1x1(x_flat, params["gp_w"], params["gp_b"], out_dtype=jnp.bfloat16)
    gp = gp.reshape(B, T, H, W, 2 * Ci)

    # sub_sample=True: MaxPool3d(kernel=(1,2,2)) after the conv (floors odd H/W).
    # TODO(synk): fuse the pool into the g/phi conv kernel to save one HBM
    # round trip over the full-resolution (B,T,H,W,2*Ci) intermediate.
    H2, W2 = H // 2, W // 2
    gp = gp[:, :, : 2 * H2, : 2 * W2, :]
    gp = gp.reshape(B, T, H2, 2, W2, 2, 2 * Ci).max(axis=(3, 5))
    Ns = T * H2 * W2
    gp = gp.reshape(B, Ns, 2 * Ci)
    g_x = gp[..., :Ci]                                   # (B, Ns, Ci)
    phi_t = jnp.transpose(gp[..., Ci:], (0, 2, 1))       # (B, Ci, Ns) pre-transposed

    # theta conv on mask_pred (full resolution, no pooling).
    theta = conv1x1(m_flat, params["theta_w"], params["theta_b"],
                    out_dtype=jnp.bfloat16).reshape(B, N, Ci)

    # non-local attention (tiled two-pass query-axis softmax).
    y = nonlocal_attention(theta, phi_t, g_x)            # (B, N, Ci) bf16

    # self.W conv with BatchNorm folded in (eval-mode stats) + fused residual.
    # With the torch init (BN weight/bias == 0) the folded weights are zero and
    # z == x exactly, matching the torch module in any BN mode.
    z_flat = conv1x1(y.reshape(B * N, Ci), params["W_w_folded"],
                     params["W_b_folded"], out_dtype=jnp.float32,
                     residual=x_flat)
    return jnp.transpose(z_flat.reshape(B, T, H, W, C), (0, 4, 1, 2, 3))


def prepare_params(raw):
    """Fuse g/phi weights, fold eval-mode BN into W, cast matmul weights to bf16."""
    eps = 1e-5
    scale = raw["bn_gamma"] / jnp.sqrt(raw["bn_var"] + eps)                 # (C,)
    w_fold = (raw["W_w"] * scale[None, :]).astype(jnp.bfloat16)             # (Ci, C)
    b_fold = ((raw["W_b"][0] - raw["bn_mean"]) * scale + raw["bn_beta"])[None, :]
    return dict(
        gp_w=jnp.concatenate([raw["g_w"], raw["phi_w"]], axis=1).astype(jnp.bfloat16),
        gp_b=jnp.concatenate([raw["g_b"], raw["phi_b"]], axis=1).astype(jnp.float32),
        theta_w=raw["theta_w"].astype(jnp.bfloat16),
        theta_b=raw["theta_b"].astype(jnp.float32),
        W_w_folded=w_fold,
        W_b_folded=b_fold.astype(jnp.float32),
    )


# --------------------------------------------------------------------------
# Pure-JAX f32 reference (mirrors the torch forward, eval-mode BN) + init
# --------------------------------------------------------------------------
def _reference_forward(x, mask_pred, raw):
    B, C, T, H, W = x.shape
    Ci = raw["g_w"].shape[1]
    x_cl = jnp.transpose(x, (0, 2, 3, 4, 1))
    m_cl = jnp.transpose(mask_pred, (0, 2, 3, 4, 1))

    def conv(v, w, b):
        return jnp.tensordot(v, w, axes=([-1], [0])) + b[0]

    def pool(v):
        H2, W2 = H // 2, W // 2
        v = v[:, :, : 2 * H2, : 2 * W2, :]
        return v.reshape(B, T, H2, 2, W2, 2, v.shape[-1]).max(axis=(3, 5))

    g_x = pool(conv(x_cl, raw["g_w"], raw["g_b"])).reshape(B, -1, Ci)
    phi = pool(conv(x_cl, raw["phi_w"], raw["phi_b"])).reshape(B, -1, Ci)
    theta = conv(m_cl, raw["theta_w"], raw["theta_b"]).reshape(B, -1, Ci)

    f = jnp.einsum("bnc,bmc->bnm", theta, phi)
    f_div_c = jax.nn.softmax(f, axis=1)                  # torch: F.softmax(f, dim=1)
    y = jnp.einsum("bnm,bmc->bnc", f_div_c, g_x)

    scale = raw["bn_gamma"] / jnp.sqrt(raw["bn_var"] + 1e-5)
    wy = jnp.tensordot(y, raw["W_w"], axes=([-1], [0])) + raw["W_b"][0]
    wy = (wy - raw["bn_mean"]) * scale + raw["bn_beta"]
    z_cl = wy.reshape(B, T, H, W, C) + x_cl
    return jnp.transpose(z_cl, (0, 4, 1, 2, 3))


def _init_conv(key, cin, cout):
    kw, kb = jax.random.split(key)
    bound = 1.0 / math.sqrt(cin)          # torch Conv3d kaiming-uniform default
    w = jax.random.uniform(kw, (cin, cout), jnp.float32, -bound, bound)
    b = jax.random.uniform(kb, (1, cout), jnp.float32, -bound, bound)
    return w, b


if __name__ == "__main__":
    key = jax.random.PRNGKey(0)
    B, C, T, H, W = 2, 4, 2, 8, 8               # small (b, c, t, h, w)
    Ci = max(C // 2, 1)                         # inter_channels = in_channels // 2

    k = jax.random.split(key, 6)
    g_w, g_b = _init_conv(k[0], C, Ci)
    theta_w, theta_b = _init_conv(k[1], C, Ci)
    phi_w, phi_b = _init_conv(k[2], C, Ci)
    W_w, W_b = _init_conv(k[3], Ci, C)

    raw = dict(
        g_w=g_w, g_b=g_b, theta_w=theta_w, theta_b=theta_b,
        phi_w=phi_w, phi_b=phi_b, W_w=W_w, W_b=W_b,
        # torch init: nn.init.constant(W[1].weight, 0), nn.init.constant(W[1].bias, 0)
        bn_gamma=jnp.zeros((C,), jnp.float32),
        bn_beta=jnp.zeros((C,), jnp.float32),
        bn_mean=jnp.zeros((C,), jnp.float32),
        bn_var=jnp.ones((C,), jnp.float32),
    )

    x = jax.random.normal(k[4], (B, C, T, H, W), jnp.float32)
    mask_pred = jax.random.normal(k[5], (B, C, T, H, W), jnp.float32)

    fwd = jax.jit(psgm_forward)

    # 1) module-faithful init (BN gamma/beta == 0)  =>  z == x exactly.
    z = fwd(x, mask_pred, prepare_params(raw))
    jax.block_until_ready(z)
    assert z.shape == (B, C, T, H, W) and z.dtype == jnp.float32
    assert bool(jnp.allclose(z, x)), "zero-init W branch must return the identity"

    # 2) non-trivial BN params: compare against the pure-JAX f32 reference
    #    (bf16 matmul operands => loose tolerance).
    raw2 = dict(raw)
    raw2["bn_gamma"] = jnp.full((C,), 0.8, jnp.float32)
    raw2["bn_beta"] = jnp.full((C,), 0.1, jnp.float32)
    raw2["bn_mean"] = jnp.full((C,), 0.05, jnp.float32)
    raw2["bn_var"] = jnp.full((C,), 1.3, jnp.float32)
    z2 = fwd(x, mask_pred, prepare_params(raw2))
    z2_ref = _reference_forward(x, mask_pred, raw2)
    jax.block_until_ready(z2)
    assert bool(jnp.allclose(z2, z2_ref, atol=1e-1, rtol=1e-1)), "mismatch vs reference"

    print("KERNEL_OK")
</pallas_src>

<mosaic_0001>
module attributes {stable_mosaic.version = 11 : i64} {
  func.func @_conv1x1_kernel(%arg0: i32, %arg1: memref<256x4xf32, #tpu.memory_space<vmem>>, %arg2: memref<4x2xbf16, #tpu.memory_space<vmem>>, %arg3: memref<1x2xf32, #tpu.memory_space<vmem>>, %arg4: memref<256x2xbf16, #tpu.memory_space<vmem>>) attributes {dimension_semantics = [#tpu.dimension_semantics<parallel>], iteration_bounds = array<i64: 1>, scalar_prefetch = 0 : i64, scratch_operands = 0 : i64, tpu.core_type = #tpu.core_type<tc>, window_params = [{transform_indices = @transform_0, window_bounds = array<i64: 256, 4>}, {pipeline_mode = #tpu.pipeline_mode<synchronous>, transform_indices = @transform_1, window_bounds = array<i64: 4, 2>}, {pipeline_mode = #tpu.pipeline_mode<synchronous>, transform_indices = @transform_2, window_bounds = array<i64: 1, 2>}, {transform_indices = @transform_3, window_bounds = array<i64: 256, 2>}]} {
    %c0 = arith.constant 0 : index
    %c0_0 = arith.constant 0 : index
    %0 = vector.load %arg1[%c0, %c0_0] : memref<256x4xf32, #tpu.memory_space<vmem>>, vector<256x4xf32>
    %1 = arith.truncf %0 : vector<256x4xf32> to vector<256x4xbf16>
    %c0_1 = arith.constant 0 : index
    %c0_2 = arith.constant 0 : index
    %2 = vector.load %arg2[%c0_1, %c0_2] : memref<4x2xbf16, #tpu.memory_space<vmem>>, vector<4x2xbf16>
    %cst = arith.constant dense<0.000000e+00> : vector<256x2xf32>
    %3 = tpu.matmul %1, %2, %cst {dimension_numbers = #tpu.dot_dimension_numbers<[1], [0], [0], [1], [0, 0, 1, 1], [], []>} : vector<256x4xbf16>, vector<4x2xbf16>, vector<256x2xf32> -> vector<256x2xf32>
    %c0_3 = arith.constant 0 : index
    %c0_4 = arith.constant 0 : index
    %4 = vector.load %arg3[%c0_3, %c0_4] : memref<1x2xf32, #tpu.memory_space<vmem>>, vector<1x2xf32>
    %5 = vector.broadcast %4 : vector<1x2xf32> to vector<256x2xf32>
    %6 = arith.addf %3, %5 : vector<256x2xf32>
    %7 = arith.truncf %6 : vector<256x2xf32> to vector<256x2xbf16>
    %c0_5 = arith.constant 0 : index
    %c0_6 = arith.constant 0 : index
    %8 = vector.load %arg4[%c0_5, %c0_6] : memref<256x2xbf16, #tpu.memory_space<vmem>>, vector<256x2xbf16>
    tpu.vector_store %arg4[%c0_5, %c0_6], %7 {strides = array<i32>} : memref<256x2xbf16, #tpu.memory_space<vmem>>, vector<256x2xbf16>,
    return
  }
  func.func @transform_0(%arg0: i32) -> (i32, i32) {
    %c0_i32 = arith.constant 0 : i32
    %c0_i32_0 = arith.constant 0 : i32
    return %arg0, %c0_i32 : i32, i32
  }
  func.func @transform_1(%arg0: i32) -> (i32, i32) {
    %c0_i32 = arith.constant 0 : i32
    %c0_i32_0 = arith.constant 0 : i32
    %c0_i32_1 = arith.constant 0 : i32
    return %c0_i32, %c0_i32_0 : i32, i32
  }
  func.func @transform_2(%arg0: i32) -> (i32, i32) {
    %c0_i32 = arith.constant 0 : i32
    %c0_i32_0 = arith.constant 0 : i32
    %c0_i32_1 = arith.constant 0 : i32
    return %c0_i32, %c0_i32_0 : i32, i32
  }
  func.func @transform_3(%arg0: i32) -> (i32, i32) {
    %c0_i32 = arith.constant 0 : i32
    %c0_i32_0 = arith.constant 0 : i32
    return %arg0, %c0_i32 : i32, i32
  }
}

module attributes {stable_mosaic.version = 11 : i64} {
  func.func @_conv1x1_kernel(%arg0: i32, %arg1: memref<256x4xf32, #tpu.memory_space<vmem>>, %arg2: memref<4x4xbf16, #tpu.memory_space<vmem>>, %arg3: memref<1x4xf32, #tpu.memory_space<vmem>>, %arg4: memref<256x4xbf16, #tpu.memory_space<vmem>>) attributes {dimension_semantics = [#tpu.dimension_semantics<parallel>], iteration_bounds = array<i64: 1>, scalar_prefetch = 0 : i64, scratch_operands = 0 : i64, tpu.core_type = #tpu.core_type<tc>, window_params = [{transform_indices = @transform_0, window_bounds = array<i64: 256, 4>}, {pipeline_mode = #tpu.pipeline_mode<synchronous>, transform_indices = @transform_1, window_bounds = array<i64: 4, 4>}, {pipeline_mode = #tpu.pipeline_mode<synchronous>, transform_indices = @transform_2, window_bounds = array<i64: 1, 4>}, {transform_indices = @transform_3, window_bounds = array<i64: 256, 4>}]} {
    %c0 = arith.constant 0 : index
    %c0_0 = arith.constant 0 : index
    %0 = vector.load %arg1[%c0, %c0_0] : memref<256x4xf32, #tpu.memory_space<vmem>>, vector<256x4xf32>
    %1 = arith.truncf %0 : vector<256x4xf32> to vector<256x4xbf16>
    %c0_1 = arith.constant 0 : index
    %c0_2 = arith.constant 0 : index
    %2 = vector.load %arg2[%c0_1, %c0_2] : memref<4x4xbf16, #tpu.memory_space<vmem>>, vector<4x4xbf16>
    %cst = arith.constant dense<0.000000e+00> : vector<256x4xf32>
    %3 = tpu.matmul %1, %2, %cst {dimension_numbers = #tpu.dot_dimension_numbers<[1], [0], [0], [1], [0, 0, 1, 1], [], []>} : vector<256x4xbf16>, vector<4x4xbf16>, vector<256x4xf32> -> vector<256x4xf32>
    %c0_3 = arith.constant 0 : index
    %c0_4 = arith.constant 0 : index
    %4 = vector.load %arg3[%c0_3, %c0_4] : memref<1x4xf32, #tpu.memory_space<vmem>>, vector<1x4xf32>
    %5 = vector.broadcast %4 : vector<1x4xf32> to vector<256x4xf32>
    %6 = arith.addf %3, %5 : vector<256x4xf32>
    %7 = arith.truncf %6 : vector<256x4xf32> to vector<256x4xbf16>
    %c0_5 = arith.constant 0 : index
    %c0_6 = arith.constant 0 : index
    %8 = vector.load %arg4[%c0_5, %c0_6] : memref<256x4xbf16, #tpu.memory_space<vmem>>, vector<256x4xbf16>
    tpu.vector_store %arg4[%c0_5, %c0_6], %7 {strides = array<i32>} : memref<256x4xbf16, #tpu.memory_space<vmem>>, vector<256x4xbf16>,
    return
  }
  func.func @transform_0(%arg0: i32) -> (i32, i32) {
    %c0_i32 = arith.constant 0 : i32
    %c0_i32_0 = arith.constant 0 : i32
    return %arg0, %c0_i32 : i32, i32
  }
  func.func @transform_1(%arg0: i32) -> (i32, i32) {
    %c0_i32 = arith.constant 0 : i32
    %c0_i32_0 = arith.constant 0 : i32
    %c0_i32_1 = arith.constant 0 : i32
    return %c0_i32, %c0_i32_0 : i32, i32
  }
  func.func @transform_2(%arg0: i32) -> (i32, i32) {
    %c0_i32 = arith.constant 0 : i32
    %c0_i32_0 = arith.constant 0 : i32
    %c0_i32_1 = arith.constant 0 : i32
    return %c0_i32, %c0_i32_0 : i32, i32
  }
  func.func @transform_3(%arg0: i32) -> (i32, i32) {
    %c0_i32 = arith.constant 0 : i32
    %c0_i32_0 = arith.constant 0 : i32
    return %arg0, %c0_i32 : i32, i32
  }
}

module attributes {stable_mosaic.version = 11 : i64} {
  func.func @_softmax_stats_kernel(%arg0: i32, %arg1: i32, %arg2: i32, %arg3: memref<1x128x2xbf16, #tpu.memory_space<vmem>>, %arg4: memref<1x2x32xbf16, #tpu.memory_space<vmem>>, %arg5: memref<1x1x32xf32, #tpu.memory_space<vmem>>, %arg6: memref<1x1x32xf32, #tpu.memory_space<vmem>>, %arg7: memref<1x32xf32, #tpu.memory_space<vmem>>, %arg8: memref<1x32xf32, #tpu.memory_space<vmem>>) attributes {dimension_semantics = [#tpu.dimension_semantics<parallel>, #tpu.dimension_semantics<parallel>, #tpu.dimension_semantics<arbitrary>], iteration_bounds = array<i64: 2, 1, 1>, scalar_prefetch = 0 : i64, scratch_operands = 2 : i64, tpu.core_type = #tpu.core_type<tc>, window_params = [{transform_indices = @transform_0, window_bounds = array<i64: 1, 128, 2>}, {transform_indices = @transform_1, window_bounds = array<i64: 1, 2, 32>}, {transform_indices = @transform_2, window_bounds = array<i64: 1, 1, 32>}, {transform_indices = @transform_3, window_bounds = array<i64: 1, 1, 32>}]} {
    %c0_i32 = arith.constant 0 : i32
    %0 = arith.cmpi eq, %arg2, %c0_i32 : i32
    %1 = arith.extui %0 : i1 to i32
    %c0_i32_0 = arith.constant 0 : i32
    %2 = arith.cmpi ne, %1, %c0_i32_0 : i32
    scf.if %2 {
      %cst_20 = arith.constant 0xFF800000 : f32
      %28 = vector.broadcast %cst_20 : f32 to vector<1x32xf32>
      %c0_21 = arith.constant 0 : index
      %c0_22 = arith.constant 0 : index
      %29 = vector.load %arg7[%c0_21, %c0_22] : memref<1x32xf32, #tpu.memory_space<vmem>>, vector<1x32xf32>
      tpu.vector_store %arg7[%c0_21, %c0_22], %28 {strides = array<i32>} : memref<1x32xf32, #tpu.memory_space<vmem>>, vector<1x32xf32>,
      %cst_23 = arith.constant 0.000000e+00 : f32
      %30 = vector.broadcast %cst_23 : f32 to vector<1x32xf32>
      %c0_24 = arith.constant 0 : index
      %c0_25 = arith.constant 0 : index
      %31 = vector.load %arg8[%c0_24, %c0_25] : memref<1x32xf32, #tpu.memory_space<vmem>>, vector<1x32xf32>
      tpu.vector_store %arg8[%c0_24, %c0_25], %30 {strides = array<i32>} : memref<1x32xf32, #tpu.memory_space<vmem>>, vector<1x32xf32>,
    } else {
    }
    %c0 = arith.constant 0 : index
    %c0_1 = arith.constant 0 : index
    %c0_2 = arith.constant 0 : index
    %3 = vector.load %arg3[%c0, %c0_1, %c0_2] : memref<1x128x2xbf16, #tpu.memory_space<vmem>>, vector<1x128x2xbf16>
    %4 = vector.shape_cast %3 : vector<1x128x2xbf16> to vector<128x2xbf16>
    %c0_3 = arith.constant 0 : index
    %c0_4 = arith.constant 0 : index
    %c0_5 = arith.constant 0 : index
    %5 = vector.load %arg4[%c0_3, %c0_4, %c0_5] : memref<1x2x32xbf16, #tpu.memory_space<vmem>>, vector<1x2x32xbf16>
    %6 = vector.shape_cast %5 : vector<1x2x32xbf16> to vector<2x32xbf16>
    %cst = arith.constant dense<0.000000e+00> : vector<128x32xf32>
    %7 = tpu.matmul %4, %6, %cst {dimension_numbers = #tpu.dot_dimension_numbers<[1], [0], [0], [1], [0, 0, 1, 1], [], []>} : vector<128x2xbf16>, vector<2x32xbf16>, vector<128x32xf32> -> vector<128x32xf32>
    %cst_6 = arith.constant dense<0xFF800000> : vector<32xf32>
    %8 = vector.multi_reduction <maximumf>, %7, %cst_6 [0] : vector<128x32xf32> to vector<32xf32>
    %9 = vector.shape_cast %8 : vector<32xf32> to vector<1x32xf32>
    %c0_7 = arith.constant 0 : index
    %c0_8 = arith.constant 0 : index
    %10 = vector.load %arg7[%c0_7, %c0_8] : memref<1x32xf32, #tpu.memory_space<vmem>>, vector<1x32xf32>
    %11 = arith.maximumf %10, %9 : vector<1x32xf32>
    %c0_9 = arith.constant 0 : index
    %c0_10 = arith.constant 0 : index
    %12 = vector.load %arg7[%c0_9, %c0_10] : memref<1x32xf32, #tpu.memory_space<vmem>>, vector<1x32xf32>
    %13 = arith.subf %12, %11 : vector<1x32xf32>
    %14 = math.exp %13 : vector<1x32xf32>
    %c0_11 = arith.constant 0 : index
    %c0_12 = arith.constant 0 : index
    %15 = vector.load %arg8[%c0_11, %c0_12] : memref<1x32xf32, #tpu.memory_space<vmem>>, vector<1x32xf32>
    %16 = arith.mulf %15, %14 : vector<1x32xf32>
    %17 = vector.broadcast %11 : vector<1x32xf32> to vector<128x32xf32>
    %18 = arith.subf %7, %17 : vector<128x32xf32>
    %19 = math.exp %18 : vector<128x32xf32>
    %cst_13 = arith.constant dense<0.000000e+00> : vector<32xf32>
    %20 = vector.multi_reduction <add>, %19, %cst_13 [0] : vector<128x32xf32> to vector<32xf32>
    %21 = vector.shape_cast %20 : vector<32xf32> to vector<1x32xf32>
    %22 = arith.addf %16, %21 : vector<1x32xf32>
    %c0_14 = arith.constant 0 : index
    %c0_15 = arith.constant 0 : index
    %23 = vector.load %arg8[%c0_14, %c0_15] : memref<1x32xf32, #tpu.memory_space<vmem>>, vector<1x32xf32>
    tpu.vector_store %arg8[%c0_14, %c0_15], %22 {strides = array<i32>} : memref<1x32xf32, #tpu.memory_space<vmem>>, vector<1x32xf32>,
    %c0_16 = arith.constant 0 : index
    %c0_17 = arith.constant 0 : index
    %24 = vector.load %arg7[%c0_16, %c0_17] : memref<1x32xf32, #tpu.memory_space<vmem>>, vector<1x32xf32>
    tpu.vector_store %arg7[%c0_16, %c0_17], %11 {strides = array<i32>} : memref<1x32xf32, #tpu.memory_space<vmem>>, vector<1x32xf32>,
    %c0_i32_18 = arith.constant 0 : i32
    %25 = arith.cmpi eq, %arg2, %c0_i32_18 : i32
    %26 = arith.extui %25 : i1 to i32
    %c0_i32_19 = arith.constant 0 : i32
    %27 = arith.cmpi ne, %26, %c0_i32_19 : i32
    scf.if %27 {
      %c0_20 = arith.constant 0 : index
      %c0_21 = arith.constant 0 : index
      %28 = vector.load %arg7[%c0_20, %c0_21] : memref<1x32xf32, #tpu.memory_space<vmem>>, vector<1x32xf32>
      %c0_22 = arith.constant 0 : index
      %c0_23 = arith.constant 0 : index
      %c0_24 = arith.constant 0 : index
      %29 = vector.load %arg5[%c0_22, %c0_23, %c0_24] : memref<1x1x32xf32, #tpu.memory_space<vmem>>, vector<1x1x32xf32>
      %30 = vector.shape_cast %29 : vector<1x1x32xf32> to vector<1x32xf32>
      %31 = vector.shape_cast %28 : vector<1x32xf32> to vector<1x1x32xf32>
      tpu.vector_store %arg5[%c0_22, %c0_23, %c0_24], %31 {strides = array<i32>} : memref<1x1x32xf32, #tpu.memory_space<vmem>>, vector<1x1x32xf32>,
      %c0_25 = arith.constant 0 : index
      %c0_26 = arith.constant 0 : index
      %32 = vector.load %arg8[%c0_25, %c0_26] : memref<1x32xf32, #tpu.memory_space<vmem>>, vector<1x32xf32>
      %33 = tpu.reciprocal %32 : vector<1x32xf32> -> vector<1x32xf32>
      %c0_27 = arith.constant 0 : index
      %c0_28 = arith.constant 0 : index
      %c0_29 = arith.constant 0 : index
      %34 = vector.load %arg6[%c0_27, %c0_28, %c0_29] : memref<1x1x32xf32, #tpu.memory_space<vmem>>, vector<1x1x32xf32>
      %35 = vector.shape_cast %34 : vector<1x1x32xf32> to vector<1x32xf32>
      %36 = vector.shape_cast %33 : vector<1x32xf32> to vector<1x1x32xf32>
      tpu.vector_store %arg6[%c0_27, %c0_28, %c0_29], %36 {strides = array<i32>} : memref<1x1x32xf32, #tpu.memory_space<vmem>>, vector<1x1x32xf32>,
    } else {
    }
    return
  }
  func.func @transform_0(%arg0: i32, %arg1: i32, %arg2: i32) -> (i32, i32, i32) {
    %c0_i32 = arith.constant 0 : i32
    %c0_i32_0 = arith.constant 0 : i32
    return %arg0, %arg2, %c0_i32 : i32, i32, i32
  }
  func.func @transform_1(%arg0: i32, %arg1: i32, %arg2: i32) -> (i32, i32, i32) {
    %c0_i32 = arith.constant 0 : i32
    %c0_i32_0 = arith.constant 0 : i32
    return %arg0, %c0_i32, %arg1 : i32, i32, i32
  }
  func.func @transform_2(%arg0: i32, %arg1: i32, %arg2: i32) -> (i32, i32, i32) {
    %c0_i32 = arith.constant 0 : i32
    %c0_i32_0 = arith.constant 0 : i32
    return %arg0, %c0_i32, %arg1 : i32, i32, i32
  }
  func.func @transform_3(%arg0: i32, %arg1: i32, %arg2: i32) -> (i32, i32, i32) {
    %c0_i32 = arith.constant 0 : i32
    %c0_i32_0 = arith.constant 0 : i32
    return %arg0, %c0_i32, %arg1 : i32, i32, i32
  }
}

module attributes {stable_mosaic.version = 11 : i64} {
  func.func @_attn_apply_kernel(%arg0: i32, %arg1: i32, %arg2: i32, %arg3: memref<1x128x2xbf16, #tpu.memory_space<vmem>>, %arg4: memref<1x2x32xbf16, #tpu.memory_space<vmem>>, %arg5: memref<1x32x2xbf16, #tpu.memory_space<vmem>>, %arg6: memref<1x1x32xf32, #tpu.memory_space<vmem>>, %arg7: memref<1x1x32xf32, #tpu.memory_space<vmem>>, %arg8: memref<1x128x2xbf16, #tpu.memory_space<vmem>>, %arg9: memref<128x2xf32, #tpu.memory_space<vmem>>) attributes {dimension_semantics = [#tpu.dimension_semantics<parallel>, #tpu.dimension_semantics<parallel>, #tpu.dimension_semantics<arbitrary>], iteration_bounds = array<i64: 2, 1, 1>, scalar_prefetch = 0 : i64, scratch_operands = 1 : i64, tpu.core_type = #tpu.core_type<tc>, window_params = [{transform_indices = @transform_0, window_bounds = array<i64: 1, 128, 2>}, {transform_indices = @transform_1, window_bounds = array<i64: 1, 2, 32>}, {transform_indices = @transform_2, window_bounds = array<i64: 1, 32, 2>}, {transform_indices = @transform_3, window_bounds = array<i64: 1, 1, 32>}, {transform_indices = @transform_4, window_bounds = array<i64: 1, 1, 32>}, {transform_indices = @transform_5, window_bounds = array<i64: 1, 128, 2>}]} {
    %c0_i32 = arith.constant 0 : i32
    %0 = arith.cmpi eq, %arg2, %c0_i32 : i32
    %1 = arith.extui %0 : i1 to i32
    %c0_i32_0 = arith.constant 0 : i32
    %2 = arith.cmpi ne, %1, %c0_i32_0 : i32
    scf.if %2 {
      %cst_22 = arith.constant 0.000000e+00 : f32
      %27 = vector.broadcast %cst_22 : f32 to vector<128x2xf32>
      %c0_23 = arith.constant 0 : index
      %c0_24 = arith.constant 0 : index
      %28 = vector.load %arg9[%c0_23, %c0_24] : memref<128x2xf32, #tpu.memory_space<vmem>>, vector<128x2xf32>
      tpu.vector_store %arg9[%c0_23, %c0_24], %27 {strides = array<i32>} : memref<128x2xf32, #tpu.memory_space<vmem>>, vector<128x2xf32>,
    } else {
    }
    %c0 = arith.constant 0 : index
    %c0_1 = arith.constant 0 : index
    %c0_2 = arith.constant 0 : index
    %3 = vector.load %arg3[%c0, %c0_1, %c0_2] : memref<1x128x2xbf16, #tpu.memory_space<vmem>>, vector<1x128x2xbf16>
    %4 = vector.shape_cast %3 : vector<1x128x2xbf16> to vector<128x2xbf16>
    %c0_3 = arith.constant 0 : index
    %c0_4 = arith.constant 0 : index
    %c0_5 = arith.constant 0 : index
    %5 = vector.load %arg4[%c0_3, %c0_4, %c0_5] : memref<1x2x32xbf16, #tpu.memory_space<vmem>>, vector<1x2x32xbf16>
    %6 = vector.shape_cast %5 : vector<1x2x32xbf16> to vector<2x32xbf16>
    %cst = arith.constant dense<0.000000e+00> : vector<128x32xf32>
    %7 = tpu.matmul %4, %6, %cst {dimension_numbers = #tpu.dot_dimension_numbers<[1], [0], [0], [1], [0, 0, 1, 1], [], []>} : vector<128x2xbf16>, vector<2x32xbf16>, vector<128x32xf32> -> vector<128x32xf32>
    %c0_6 = arith.constant 0 : index
    %c0_7 = arith.constant 0 : index
    %c0_8 = arith.constant 0 : index
    %8 = vector.load %arg6[%c0_6, %c0_7, %c0_8] : memref<1x1x32xf32, #tpu.memory_space<vmem>>, vector<1x1x32xf32>
    %9 = vector.shape_cast %8 : vector<1x1x32xf32> to vector<1x32xf32>
    %10 = vector.broadcast %9 : vector<1x32xf32> to vector<128x32xf32>
    %11 = arith.subf %7, %10 : vector<128x32xf32>
    %12 = math.exp %11 : vector<128x32xf32>
    %c0_9 = arith.constant 0 : index
    %c0_10 = arith.constant 0 : index
    %c0_11 = arith.constant 0 : index
    %13 = vector.load %arg7[%c0_9, %c0_10, %c0_11] : memref<1x1x32xf32, #tpu.memory_space<vmem>>, vector<1x1x32xf32>
    %14 = vector.shape_cast %13 : vector<1x1x32xf32> to vector<1x32xf32>
    %15 = vector.broadcast %14 : vector<1x32xf32> to vector<128x32xf32>
    %16 = arith.mulf %12, %15 : vector<128x32xf32>
    %c0_12 = arith.constant 0 : index
    %c0_13 = arith.constant 0 : index
    %17 = vector.load %arg9[%c0_12, %c0_13] : memref<128x2xf32, #tpu.memory_space<vmem>>, vector<128x2xf32>
    %18 = arith.truncf %16 : vector<128x32xf32> to vector<128x32xbf16>
    %c0_14 = arith.constant 0 : index
    %c0_15 = arith.constant 0 : index
    %c0_16 = arith.constant 0 : index
    %19 = vector.load %arg5[%c0_14, %c0_15, %c0_16] : memref<1x32x2xbf16, #tpu.memory_space<vmem>>, vector<1x32x2xbf16>
    %20 = vector.shape_cast %19 : vector<1x32x2xbf16> to vector<32x2xbf16>
    %cst_17 = arith.constant dense<0.000000e+00> : vector<128x2xf32>
    %21 = tpu.matmul %18, %20, %cst_17 {dimension_numbers = #tpu.dot_dimension_numbers<[1], [0], [0], [1], [0, 0, 1, 1], [], []>} : vector<128x32xbf16>, vector<32x2xbf16>, vector<128x2xf32> -> vector<128x2xf32>
    %22 = arith.addf %17, %21 : vector<128x2xf32>
    %c0_18 = arith.constant 0 : index
    %c0_19 = arith.constant 0 : index
    %23 = vector.load %arg9[%c0_18, %c0_19] : memref<128x2xf32, #tpu.memory_space<vmem>>, vector<128x2xf32>
    tpu.vector_store %arg9[%c0_18, %c0_19], %22 {strides = array<i32>} : memref<128x2xf32, #tpu.memory_space<vmem>>, vector<128x2xf32>,
    %c0_i32_20 = arith.constant 0 : i32
    %24 = arith.cmpi eq, %arg2, %c0_i32_20 : i32
    %25 = arith.extui %24 : i1 to i32
    %c0_i32_21 = arith.constant 0 : i32
    %26 = arith.cmpi ne, %25, %c0_i32_21 : i32
    scf.if %26 {
      %c0_22 = arith.constant 0 : index
      %c0_23 = arith.constant 0 : index
      %27 = vector.load %arg9[%c0_22, %c0_23] : memref<128x2xf32, #tpu.memory_space<vmem>>, vector<128x2xf32>
      %28 = arith.truncf %27 : vector<128x2xf32> to vector<128x2xbf16>
      %c0_24 = arith.constant 0 : index
      %c0_25 = arith.constant 0 : index
      %c0_26 = arith.constant 0 : index
      %29 = vector.load %arg8[%c0_24, %c0_25, %c0_26] : memref<1x128x2xbf16, #tpu.memory_space<vmem>>, vector<1x128x2xbf16>
      %30 = vector.shape_cast %29 : vector<1x128x2xbf16> to vector<128x2xbf16>
      %31 = vector.shape_cast %28 : vector<128x2xbf16> to vector<1x128x2xbf16>
      tpu.vector_store %arg8[%c0_24, %c0_25, %c0_26], %31 {strides = array<i32>} : memref<1x128x2xbf16, #tpu.memory_space<vmem>>, vector<1x128x2xbf16>,
    } else {
    }
    return
  }
  func.func @transform_0(%arg0: i32, %arg1: i32, %arg2: i32) -> (i32, i32, i32) {
    %c0_i32 = arith.constant 0 : i32
    %c0_i32_0 = arith.constant 0 : i32
    return %arg0, %arg1, %c0_i32 : i32, i32, i32
  }
  func.func @transform_1(%arg0: i32, %arg1: i32, %arg2: i32) -> (i32, i32, i32) {
    %c0_i32 = arith.constant 0 : i32
    %c0_i32_0 = arith.constant 0 : i32
    return %arg0, %c0_i32, %arg2 : i32, i32, i32
  }
  func.func @transform_2(%arg0: i32, %arg1: i32, %arg2: i32) -> (i32, i32, i32) {
    %c0_i32 = arith.constant 0 : i32
    %c0_i32_0 = arith.constant 0 : i32
    return %arg0, %arg2, %c0_i32 : i32, i32, i32
  }
  func.func @transform_3(%arg0: i32, %arg1: i32, %arg2: i32) -> (i32, i32, i32) {
    %c0_i32 = arith.constant 0 : i32
    %c0_i32_0 = arith.constant 0 : i32
    return %arg0, %c0_i32, %arg2 : i32, i32, i32
  }
  func.func @transform_4(%arg0: i32, %arg1: i32, %arg2: i32) -> (i32, i32, i32) {
    %c0_i32 = arith.constant 0 : i32
    %c0_i32_0 = arith.constant 0 : i32
    return %arg0, %c0_i32, %arg2 : i32, i32, i32
  }
  func.func @transform_5(%arg0: i32, %arg1: i32, %arg2: i32) -> (i32, i32, i32) {
    %c0_i32 = arith.constant 0 : i32
    %c0_i32_0 = arith.constant 0 : i32
    return %arg0, %arg1, %c0_i32 : i32, i32, i32
  }
}

module attributes {stable_mosaic.version = 11 : i64} {
  func.func @_conv1x1_res_kernel(%arg0: i32, %arg1: memref<256x2xbf16, #tpu.memory_space<vmem>>, %arg2: memref<2x4xbf16, #tpu.memory_space<vmem>>, %arg3: memref<1x4xf32, #tpu.memory_space<vmem>>, %arg4: memref<256x4xf32, #tpu.memory_space<vmem>>, %arg5: memref<256x4xf32, #tpu.memory_space<vmem>>) attributes {dimension_semantics = [#tpu.dimension_semantics<parallel>], iteration_bounds = array<i64: 1>, scalar_prefetch = 0 : i64, scratch_operands = 0 : i64, tpu.core_type = #tpu.core_type<tc>, window_params = [{transform_indices = @transform_0, window_bounds = array<i64: 256, 2>}, {pipeline_mode = #tpu.pipeline_mode<synchronous>, transform_indices = @transform_1, window_bounds = array<i64: 2, 4>}, {pipeline_mode = #tpu.pipeline_mode<synchronous>, transform_indices = @transform_2, window_bounds = array<i64: 1, 4>}, {transform_indices = @transform_3, window_bounds = array<i64: 256, 4>}, {transform_indices = @transform_4, window_bounds = array<i64: 256, 4>}]} {
    %c0 = arith.constant 0 : index
    %c0_0 = arith.constant 0 : index
    %0 = vector.load %arg1[%c0, %c0_0] : memref<256x2xbf16, #tpu.memory_space<vmem>>, vector<256x2xbf16>
    %c0_1 = arith.constant 0 : index
    %c0_2 = arith.constant 0 : index
    %1 = vector.load %arg2[%c0_1, %c0_2] : memref<2x4xbf16, #tpu.memory_space<vmem>>, vector<2x4xbf16>
    %cst = arith.constant dense<0.000000e+00> : vector<256x4xf32>
    %2 = tpu.matmul %0, %1, %cst {dimension_numbers = #tpu.dot_dimension_numbers<[1], [0], [0], [1], [0, 0, 1, 1], [], []>} : vector<256x2xbf16>, vector<2x4xbf16>, vector<256x4xf32> -> vector<256x4xf32>
    %c0_3 = arith.constant 0 : index
    %c0_4 = arith.constant 0 : index
    %3 = vector.load %arg3[%c0_3, %c0_4] : memref<1x4xf32, #tpu.memory_space<vmem>>, vector<1x4xf32>
    %4 = vector.broadcast %3 : vector<1x4xf32> to vector<256x4xf32>
    %5 = arith.addf %2, %4 : vector<256x4xf32>
    %c0_5 = arith.constant 0 : index
    %c0_6 = arith.constant 0 : index
    %6 = vector.load %arg4[%c0_5, %c0_6] : memref<256x4xf32, #tpu.memory_space<vmem>>, vector<256x4xf32>
    %7 = arith.addf %5, %6 : vector<256x4xf32>
    %c0_7 = arith.constant 0 : index
    %c0_8 = arith.constant 0 : index
    %8 = vector.load %arg5[%c0_7, %c0_8] : memref<256x4xf32, #tpu.memory_space<vmem>>, vector<256x4xf32>
    tpu.vector_store %arg5[%c0_7, %c0_8], %7 {strides = array<i32>} : memref<256x4xf32, #tpu.memory_space<vmem>>, vector<256x4xf32>,
    return
  }
  func.func @transform_0(%arg0: i32) -> (i32, i32) {
    %c0_i32 = arith.constant 0 : i32
    %c0_i32_0 = arith.constant 0 : i32
    return %arg0, %c0_i32 : i32, i32
  }
  func.func @transform_1(%arg0: i32) -> (i32, i32) {
    %c0_i32 = arith.constant 0 : i32
    %c0_i32_0 = arith.constant 0 : i32
    %c0_i32_1 = arith.constant 0 : i32
    return %c0_i32, %c0_i32_0 : i32, i32
  }
  func.func @transform_2(%arg0: i32) -> (i32, i32) {
    %c0_i32 = arith.constant 0 : i32
    %c0_i32_0 = arith.constant 0 : i32
    %c0_i32_1 = arith.constant 0 : i32
    return %c0_i32, %c0_i32_0 : i32, i32
  }
  func.func @transform_3(%arg0: i32) -> (i32, i32) {
    %c0_i32 = arith.constant 0 : i32
    %c0_i32_0 = arith.constant 0 : i32
    return %arg0, %c0_i32 : i32, i32
  }
  func.func @transform_4(%arg0: i32) -> (i32, i32) {
    %c0_i32 = arith.constant 0 : i32
    %c0_i32_0 = arith.constant 0 : i32
    return %arg0, %c0_i32 : i32, i32
  }
}

</mosaic_0001>

<llo_original>
// kernel: psgm_forward.6
$region0: #{psgm_forward.6}
  #allocation0 [shape = 'u32[]', space=smem, size = 0x4, offset = 0x4, fixed_abs, tag = 'smem constant byte address 0x4 - core index']
  #allocation1 [shape = 'u32[72,128]{1,0:T(1,128)}', space=vmem, size = 0x9000, scoped, tag = 'internal scratch']
  %s0 = inlined_call_operand.vmem [shape: f32[256,4], index: 0, kind: input, shape index: {}]
  %s1 = inlined_call_operand.vmem [shape: bf16[4,2], index: 1, kind: input, shape index: {}]
  %s2 = inlined_call_operand.vmem [shape: f32[1,2], index: 2, kind: input, shape index: {}]
  %s3 = inlined_call_operand.vmem [shape: bf16[256,2], index: 3, kind: output, shape index: {}]
  %s4 = sld [smem:[#allocation0]]
  $region22: #{psgm_forward.6} parent=0
    _
  %s6 = ssub.s32 1, %s4
  %s7 = scalar_select 0, %s6, %s4
  // Predicated region
  $region2: #{psgm_forward.6} parent=0 // pred_check
    _
  $region3: #{psgm_forward.6} parent=0 // pred_check_branch
    %9 = sbr.rel (0) target = $region5
  $region4: #{psgm_forward.6} parent=0 // pred_region
    _
  $region5: #{psgm_forward.6} parent=0 // pred_fallthru
    _
  // Predicated region
  $region6: #{psgm_forward.6} parent=0 // pred_check
    _
  $region7: #{psgm_forward.6} parent=0 // pred_check_branch
    %11 = sbr.rel (0) target = $region9
  $region8: #{psgm_forward.6} parent=0 // pred_region
    _
  $region9: #{psgm_forward.6} parent=0 // pred_fallthru
    _
  // Predicated region
  $region10: #{psgm_forward.6} parent=0 // pred_check
    _
  $region11: #{psgm_forward.6} parent=0 // pred_check_branch
    %13 = sbr.rel (0) target = $region13
  $region12: #{psgm_forward.6} parent=0 // pred_region
    _
  $region13: #{psgm_forward.6} parent=0 // pred_fallthru
    _
  %v15 = vld [vmem:[%s0] sm:$0xff]
  %v16 = vld [vmem:[%s0 + $0x8] sm:$0xff]
  %v17 = vld [vmem:[%s0 + $0x10] sm:$0xff]
  %v18 = vld [vmem:[%s0 + $0x18] sm:$0xff]
  %v19 = vld [vmem:[%s0 + $0x20] sm:$0xff]
  %v20 = vld [vmem:[%s0 + $0x28] sm:$0xff]
  %v21 = vld [vmem:[%s0 + $0x30] sm:$0xff]
  %v22 = vld [vmem:[%s0 + $0x38] sm:$0xff]
  %v23 = vld [vmem:[%s0 + $0x40] sm:$0xff]
  %v24 = vld [vmem:[%s0 + $0x48] sm:$0xff]
  %v25 = vld [vmem:[%s0 + $0x50] sm:$0xff]
  %v26 = vld [vmem:[%s0 + $0x58] sm:$0xff]
  %v27 = vld [vmem:[%s0 + $0x60] sm:$0xff]
  %v28 = vld [vmem:[%s0 + $0x68] sm:$0xff]
  %v29 = vld [vmem:[%s0 + $0x70] sm:$0xff]
  %v30 = vld [vmem:[%s0 + $0x78] sm:$0xff]
  %v31 = vld [vmem:[%s0 + $0x80] sm:$0xff]
  %v32 = vld [vmem:[%s0 + $0x88] sm:$0xff]
  %v33 = vld [vmem:[%s0 + $0x90] sm:$0xff]
  %v34 = vld [vmem:[%s0 + $0x98] sm:$0xff]
  %v35 = vld [vmem:[%s0 + $0xa0] sm:$0xff]
  %v36 = vld [vmem:[%s0 + $0xa8] sm:$0xff]
  %v37 = vld [vmem:[%s0 + $0xb0] sm:$0xff]
  %v38 = vld [vmem:[%s0 + $0xb8] sm:$0xff]
  %v39 = vld [vmem:[%s0 + $0xc0] sm:$0xff]
  %v40 = vld [vmem:[%s0 + $0xc8] sm:$0xff]
  %v41 = vld [vmem:[%s0 + $0xd0] sm:$0xff]
  %v42 = vld [vmem:[%s0 + $0xd8] sm:$0xff]
  %v43 = vld [vmem:[%s0 + $0xe0] sm:$0xff]
  %v44 = vld [vmem:[%s0 + $0xe8] sm:$0xff]
  %v45 = vld [vmem:[%s0 + $0xf0] sm:$0xff]
  %v46 = vld [vmem:[%s0 + $0xf8] sm:$0xff]
  %v47 = vpack.c.bf16 %v16, %v15
  %v48 = vpack.c.bf16 %v18, %v17
  %v49 = vpack.c.bf16 %v20, %v19
  %v50 = vpack.c.bf16 %v22, %v21
  %v51 = vpack.c.bf16 %v24, %v23
  %v52 = vpack.c.bf16 %v26, %v25
  %v53 = vpack.c.bf16 %v28, %v27
  %v54 = vpack.c.bf16 %v30, %v29
  %v55 = vpack.c.bf16 %v32, %v31
  %v56 = vpack.c.bf16 %v34, %v33
  %v57 = vpack.c.bf16 %v36, %v35
  %v58 = vpack.c.bf16 %v38, %v37
  %v59 = vpack.c.bf16 %v40, %v39
  %v60 = vpack.c.bf16 %v42, %v41
  %v61 = vpack.c.bf16 %v44, %v43
  %v62 = vpack.c.bf16 %v46, %v45
  %v63 = vld [vmem:[%s1] sm:$0x3]
  %v64 = vld [vmem:[%s2] sm:$0x1]
  %v66 = vperm.slane %v64, 0
  %vm68 = vcmask 31744
  %v70 = vsel %vm68, %v47, 0
  %v73 = vsel %vm68, %v48, 0
  %v76 = vsel %vm68, %v49, 0
  %v79 = vsel %vm68, %v50, 0
  %v82 = vsel %vm68, %v51, 0
  %v85 = vsel %vm68, %v52, 0
  %v88 = vsel %vm68, %v53, 0
  %v91 = vsel %vm68, %v54, 0
  %v94 = vsel %vm68, %v55, 0
  %v97 = vsel %vm68, %v56, 0
  %v100 = vsel %vm68, %v57, 0
  %v103 = vsel %vm68, %v58, 0
  %v106 = vsel %vm68, %v59, 0
  %v109 = vsel %vm68, %v60, 0
  %v112 = vsel %vm68, %v61, 0
  %v115 = vsel %vm68, %v62, 0
  %vm117 = vcmask 1041408
  %v119 = vsel %vm117, %v63, 0
  %121 = vmatpush.bf16.msra.mxu0 0
  %122 = vmatpush.bf16.msra.mxu0 0
  %123 = vmatpush.bf16.msra.mxu0 0
  %124 = vmatpush.bf16.msra.mxu0 0
  %125 = vmatpush.bf16.msra.mxu0 0
  %126 = vmatpush.bf16.msra.mxu0 0
  %127 = vmatpush.bf16.msra.mxu0 0
  %128 = vmatpush.bf16.msra.mxu0 %v119
  %129 = vmatmul.bf16.gmra.mxu0 %v70
  %v130 = vpop.f32.mrf.mxu0
  %v131 = vadd.f32 %v66, %v130
  %v132 = vpop.f32.mrf.mxu0
  %v133 = vadd.f32 %v66, %v132
  %134 = vmatmul.bf16.gmra.mxu0 %v73
  %v135 = vpop.f32.mrf.mxu0
  %v136 = vadd.f32 %v66, %v135
  %v137 = vpop.f32.mrf.mxu0
  %v138 = vadd.f32 %v66, %v137
  %139 = vmatmul.bf16.gmra.mxu0 %v76
  %v140 = vpop.f32.mrf.mxu0
  %v141 = vadd.f32 %v66, %v140
  %v142 = vpop.f32.mrf.mxu0
  %v143 = vadd.f32 %v66, %v142
  %144 = vmatmul.bf16.gmra.mxu0 %v79
  %v145 = vpop.f32.mrf.mxu0
  %v146 = vadd.f32 %v66, %v145
  %v147 = vpop.f32.mrf.mxu0
  %v148 = vadd.f32 %v66, %v147
  %149 = vmatmul.bf16.gmra.mxu0 %v82
  %v150 = vpop.f32.mrf.mxu0
  %v151 = vadd.f32 %v66, %v150
  %v152 = vpop.f32.mrf.mxu0
  %v153 = vadd.f32 %v66, %v152
  %154 = vmatmul.bf16.gmra.mxu0 %v85
  %v155 = vpop.f32.mrf.mxu0
  %v156 = vadd.f32 %v66, %v155
  %v157 = vpop.f32.mrf.mxu0
  %v158 = vadd.f32 %v66, %v157
  %159 = vmatmul.bf16.gmra.mxu0 %v88
  %v160 = vpop.f32.mrf.mxu0
  %v161 = vadd.f32 %v66, %v160
  %v162 = vpop.f32.mrf.mxu0
  %v163 = vadd.f32 %v66, %v162
  %164 = vmatmul.bf16.gmra.mxu0 %v91
  %v165 = vpop.f32.mrf.mxu0
  %v166 = vadd.f32 %v66, %v165
  %v167 = vpop.f32.mrf.mxu0
  %v168 = vadd.f32 %v66, %v167
  %169 = vmatmul.bf16.gmra.mxu0 %v94
  %v170 = vpop.f32.mrf.mxu0
  %v171 = vadd.f32 %v66, %v170
  %v172 = vpop.f32.mrf.mxu0
  %v173 = vadd.f32 %v66, %v172
  %174 = vmatmul.bf16.gmra.mxu0 %v97
  %v175 = vpop.f32.mrf.mxu0
  %v176 = vadd.f32 %v66, %v175
  %v177 = vpop.f32.mrf.mxu0
  %v178 = vadd.f32 %v66, %v177
  %179 = vmatmul.bf16.gmra.mxu0 %v100
  %v180 = vpop.f32.mrf.mxu0
  %v181 = vadd.f32 %v66, %v180
  %v182 = vpop.f32.mrf.mxu0
  %v183 = vadd.f32 %v66, %v182
  %184 = vmatmul.bf16.gmra.mxu0 %v103
  %v185 = vpop.f32.mrf.mxu0
  %v186 = vadd.f32 %v66, %v185
  %v187 = vpop.f32.mrf.mxu0
  %v188 = vadd.f32 %v66, %v187
  %189 = vmatmul.bf16.gmra.mxu0 %v106
  %v190 = vpop.f32.mrf.mxu0
  %v191 = vadd.f32 %v66, %v190
  %v192 = vpop.f32.mrf.mxu0
  %v193 = vadd.f32 %v66, %v192
  %194 = vmatmul.bf16.gmra.mxu0 %v109
  %v195 = vpop.f32.mrf.mxu0
  %v196 = vadd.f32 %v66, %v195
  %v197 = vpop.f32.mrf.mxu0
  %v198 = vadd.f32 %v66, %v197
  %199 = vmatmul.bf16.gmra.mxu0 %v112
  %v200 = vpop.f32.mrf.mxu0
  %v201 = vadd.f32 %v66, %v200
  %v202 = vpop.f32.mrf.mxu0
  %v203 = vadd.f32 %v66, %v202
  %204 = vmatmul.bf16.gmra.mxu0 %v115
  %v205 = vpop.f32.mrf.mxu0
  %v206 = vadd.f32 %v66, %v205
  %v207 = vpop.f32.mrf.mxu0
  %v208 = vadd.f32 %v66, %v207
  %209 = vdwg.mxu0
  %v210 = vpack.c.bf16 %v131, %v131
  %v211 = vpack.c.bf16 %v133, %v133
  %v212 = vpack.c.bf16 %v136, %v136
  %v213 = vpack.c.bf16 %v138, %v138
  %v214 = vpack.c.bf16 %v141, %v141
  %v215 = vpack.c.bf16 %v143, %v143
  %v216 = vpack.c.bf16 %v146, %v146
  %v217 = vpack.c.bf16 %v148, %v148
  %v218 = vpack.c.bf16 %v151, %v151
  %v219 = vpack.c.bf16 %v153, %v153
  %v220 = vpack.c.bf16 %v156, %v156
  %v221 = vpack.c.bf16 %v158, %v158
  %v222 = vpack.c.bf16 %v161, %v161
  %v223 = vpack.c.bf16 %v163, %v163
  %v224 = vpack.c.bf16 %v166, %v166
  %v225 = vpack.c.bf16 %v168, %v168
  %v226 = vpack.c.bf16 %v171, %v171
  %v227 = vpack.c.bf16 %v173, %v173
  %v228 = vpack.c.bf16 %v176, %v176
  %v229 = vpack.c.bf16 %v178, %v178
  %v230 = vpack.c.bf16 %v181, %v181
  %v231 = vpack.c.bf16 %v183, %v183
  %v232 = vpack.c.bf16 %v186, %v186
  %v233 = vpack.c.bf16 %v188, %v188
  %v234 = vpack.c.bf16 %v191, %v191
  %v235 = vpack.c.bf16 %v193, %v193
  %v236 = vpack.c.bf16 %v196, %v196
  %v237 = vpack.c.bf16 %v198, %v198
  %v238 = vpack.c.bf16 %v201, %v201
  %v239 = vpack.c.bf16 %v203, %v203
  %v240 = vpack.c.bf16 %v206, %v206
  %v241 = vpack.c.bf16 %v208, %v208
  %vm242 = vcmask 11264
  %243 = vst.msk [vmem:[%s3] sm:$0xf] %vm242, %v210
  %244 = vst.msk [vmem:[%s3 + $0x4] sm:$0xf] %vm242, %v211
  %245 = vst.msk [vmem:[%s3 + $0x8] sm:$0xf] %vm242, %v212
  %246 = vst.msk [vmem:[%s3 + $0xc] sm:$0xf] %vm242, %v213
  %247 = vst.msk [vmem:[%s3 + $0x10] sm:$0xf] %vm242, %v214
  %248 = vst.msk [vmem:[%s3 + $0x14] sm:$0xf] %vm242, %v215
  %249 = vst.msk [vmem:[%s3 + $0x18] sm:$0xf] %vm242, %v216
  %250 = vst.msk [vmem:[%s3 + $0x1c] sm:$0xf] %vm242, %v217
  %251 = vst.msk [vmem:[%s3 + $0x20] sm:$0xf] %vm242, %v218
  %252 = vst.msk [vmem:[%s3 + $0x24] sm:$0xf] %vm242, %v219
  %253 = vst.msk [vmem:[%s3 + $0x28] sm:$0xf] %vm242, %v220
  %254 = vst.msk [vmem:[%s3 + $0x2c] sm:$0xf] %vm242, %v221
  %255 = vst.msk [vmem:[%s3 + $0x30] sm:$0xf] %vm242, %v222
  %256 = vst.msk [vmem:[%s3 + $0x34] sm:$0xf] %vm242, %v223
  %257 = vst.msk [vmem:[%s3 + $0x38] sm:$0xf] %vm242, %v224
  %258 = vst.msk [vmem:[%s3 + $0x3c] sm:$0xf] %vm242, %v225
  %259 = vst.msk [vmem:[%s3 + $0x40] sm:$0xf] %vm242, %v226
  %260 = vst.msk [vmem:[%s3 + $0x44] sm:$0xf] %vm242, %v227
  %261 = vst.msk [vmem:[%s3 + $0x48] sm:$0xf] %vm242, %v228
  %262 = vst.msk [vmem:[%s3 + $0x4c] sm:$0xf] %vm242, %v229
  %263 = vst.msk [vmem:[%s3 + $0x50] sm:$0xf] %vm242, %v230
  %264 = vst.msk [vmem:[%s3 + $0x54] sm:$0xf] %vm242, %v231
  %265 = vst.msk [vmem:[%s3 + $0x58] sm:$0xf] %vm242, %v232
  %266 = vst.msk [vmem:[%s3 + $0x5c] sm:$0xf] %vm242, %v233
  %267 = vst.msk [vmem:[%s3 + $0x60] sm:$0xf] %vm242, %v234
  %268 = vst.msk [vmem:[%s3 + $0x64] sm:$0xf] %vm242, %v235
  %269 = vst.msk [vmem:[%s3 + $0x68] sm:$0xf] %vm242, %v236
  %270 = vst.msk [vmem:[%s3 + $0x6c] sm:$0xf] %vm242, %v237
  %271 = vst.msk [vmem:[%s3 + $0x70] sm:$0xf] %vm242, %v238
  %272 = vst.msk [vmem:[%s3 + $0x74] sm:$0xf] %vm242, %v239
  %273 = vst.msk [vmem:[%s3 + $0x78] sm:$0xf] %vm242, %v240
  %274 = vst.msk [vmem:[%s3 + $0x7c] sm:$0xf] %vm242, %v241
  // Predicated region
  $region14: #{psgm_forward.6} parent=0 // pred_check
    _
  $region15: #{psgm_forward.6} parent=0 // pred_check_branch
    %276 = sbr.rel (0) target = $region17
  $region16: #{psgm_forward.6} parent=0 // pred_region
    _
  $region17: #{psgm_forward.6} parent=0 // pred_fallthru
    _
  // Predicated region
  $region18: #{psgm_forward.6} parent=0 // pred_check
    _
  $region19: #{psgm_forward.6} parent=0 // pred_check_branch
    %278 = sbr.rel (0) target = $region21
  $region20: #{psgm_forward.6} parent=0 // pred_region
    _
  $region21: #{psgm_forward.6} parent=0 // pred_fallthru
    _

// kernel: psgm_forward.5
$region0: #{psgm_forward.5}
  #allocation0 [shape = 'u32[]', space=smem, size = 0x4, offset = 0x4, fixed_abs, tag = 'smem constant byte address 0x4 - core index']
  #allocation1 [shape = 'u32[72,128]{1,0:T(1,128)}', space=vmem, size = 0x9000, scoped, tag = 'internal scratch']
  %s0 = inlined_call_operand.vmem [shape: f32[256,4], index: 0, kind: input, shape index: {}]
  %s1 = inlined_call_operand.vmem [shape: bf16[4,4], index: 1, kind: input, shape index: {}]
  %s2 = inlined_call_operand.vmem [shape: f32[1,4], index: 2, kind: input, shape index: {}]
  %s3 = inlined_call_operand.vmem [shape: bf16[256,4], index: 3, kind: output, shape index: {}]
  %s4 = sld [smem:[#allocation0]]
  $region22: #{psgm_forward.5} parent=0
    _
  %s6 = ssub.s32 1, %s4
  %s7 = scalar_select 0, %s6, %s4
  // Predicated region
  $region2: #{psgm_forward.5} parent=0 // pred_check
    _
  $region3: #{psgm_forward.5} parent=0 // pred_check_branch
    %9 = sbr.rel (0) target = $region5
  $region4: #{psgm_forward.5} parent=0 // pred_region
    _
  $region5: #{psgm_forward.5} parent=0 // pred_fallthru
    _
  // Predicated region
  $region6: #{psgm_forward.5} parent=0 // pred_check
    _
  $region7: #{psgm_forward.5} parent=0 // pred_check_branch
    %11 = sbr.rel (0) target = $region9
  $region8: #{psgm_forward.5} parent=0 // pred_region
    _
  $region9: #{psgm_forward.5} parent=0 // pred_fallthru
    _
  // Predicated region
  $region10: #{psgm_forward.5} parent=0 // pred_check
    _
  $region11: #{psgm_forward.5} parent=0 // pred_check_branch
    %13 = sbr.rel (0) target = $region13
  $region12: #{psgm_forward.5} parent=0 // pred_region
    _
  $region13: #{psgm_forward.5} parent=0 // pred_fallthru
    _
  %v15 = vld [vmem:[%s0] sm:$0xff]
  %v16 = vld [vmem:[%s0 + $0x8] sm:$0xff]
  %v17 = vld [vmem:[%s0 + $0x10] sm:$0xff]
  %v18 = vld [vmem:[%s0 + $0x18] sm:$0xff]
  %v19 = vld [vmem:[%s0 + $0x20] sm:$0xff]
  %v20 = vld [vmem:[%s0 + $0x28] sm:$0xff]
  %v21 = vld [vmem:[%s0 + $0x30] sm:$0xff]
  %v22 = vld [vmem:[%s0 + $0x38] sm:$0xff]
  %v23 = vld [vmem:[%s0 + $0x40] sm:$0xff]
  %v24 = vld [vmem:[%s0 + $0x48] sm:$0xff]
  %v25 = vld [vmem:[%s0 + $0x50] sm:$0xff]
  %v26 = vld [vmem:[%s0 + $0x58] sm:$0xff]
  %v27 = vld [vmem:[%s0 + $0x60] sm:$0xff]
  %v28 = vld [vmem:[%s0 + $0x68] sm:$0xff]
  %v29 = vld [vmem:[%s0 + $0x70] sm:$0xff]
  %v30 = vld [vmem:[%s0 + $0x78] sm:$0xff]
  %v31 = vld [vmem:[%s0 + $0x80] sm:$0xff]
  %v32 = vld [vmem:[%s0 + $0x88] sm:$0xff]
  %v33 = vld [vmem:[%s0 + $0x90] sm:$0xff]
  %v34 = vld [vmem:[%s0 + $0x98] sm:$0xff]
  %v35 = vld [vmem:[%s0 + $0xa0] sm:$0xff]
  %v36 = vld [vmem:[%s0 + $0xa8] sm:$0xff]
  %v37 = vld [vmem:[%s0 + $0xb0] sm:$0xff]
  %v38 = vld [vmem:[%s0 + $0xb8] sm:$0xff]
  %v39 = vld [vmem:[%s0 + $0xc0] sm:$0xff]
  %v40 = vld [vmem:[%s0 + $0xc8] sm:$0xff]
  %v41 = vld [vmem:[%s0 + $0xd0] sm:$0xff]
  %v42 = vld [vmem:[%s0 + $0xd8] sm:$0xff]
  %v43 = vld [vmem:[%s0 + $0xe0] sm:$0xff]
  %v44 = vld [vmem:[%s0 + $0xe8] sm:$0xff]
  %v45 = vld [vmem:[%s0 + $0xf0] sm:$0xff]
  %v46 = vld [vmem:[%s0 + $0xf8] sm:$0xff]
  %v47 = vpack.c.bf16 %v16, %v15
  %v48 = vpack.c.bf16 %v18, %v17
  %v49 = vpack.c.bf16 %v20, %v19
  %v50 = vpack.c.bf16 %v22, %v21
  %v51 = vpack.c.bf16 %v24, %v23
  %v52 = vpack.c.bf16 %v26, %v25
  %v53 = vpack.c.bf16 %v28, %v27
  %v54 = vpack.c.bf16 %v30, %v29
  %v55 = vpack.c.bf16 %v32, %v31
  %v56 = vpack.c.bf16 %v34, %v33
  %v57 = vpack.c.bf16 %v36, %v35
  %v58 = vpack.c.bf16 %v38, %v37
  %v59 = vpack.c.bf16 %v40, %v39
  %v60 = vpack.c.bf16 %v42, %v41
  %v61 = vpack.c.bf16 %v44, %v43
  %v62 = vpack.c.bf16 %v46, %v45
  %v63 = vld [vmem:[%s1] sm:$0x3]
  %v64 = vld [vmem:[%s2] sm:$0x1]
  %v66 = vperm.slane %v64, 0
  %vm68 = vcmask 31744
  %v70 = vsel %vm68, %v47, 0
  %v73 = vsel %vm68, %v48, 0
  %v76 = vsel %vm68, %v49, 0
  %v79 = vsel %vm68, %v50, 0
  %v82 = vsel %vm68, %v51, 0
  %v85 = vsel %vm68, %v52, 0
  %v88 = vsel %vm68, %v53, 0
  %v91 = vsel %vm68, %v54, 0
  %v94 = vsel %vm68, %v55, 0
  %v97 = vsel %vm68, %v56, 0
  %v100 = vsel %vm68, %v57, 0
  %v103 = vsel %vm68, %v58, 0
  %v106 = vsel %vm68, %v59, 0
  %v109 = vsel %vm68, %v60, 0
  %v112 = vsel %vm68, %v61, 0
  %v115 = vsel %vm68, %v62, 0
  %vm117 = vcmask 1041408
  %v119 = vsel %vm117, %v63, 0
  %121 = vmatpush.bf16.msra.mxu0 0
  %122 = vmatpush.bf16.msra.mxu0 0
  %123 = vmatpush.bf16.msra.mxu0 0
  %124 = vmatpush.bf16.msra.mxu0 0
  %125 = vmatpush.bf16.msra.mxu0 0
  %126 = vmatpush.bf16.msra.mxu0 0
  %127 = vmatpush.bf16.msra.mxu0 0
  %128 = vmatpush.bf16.msra.mxu0 %v119
  %129 = vmatmul.bf16.gmra.mxu0 %v70
  %v130 = vpop.f32.mrf.mxu0
  %v131 = vadd.f32 %v66, %v130
  %v132 = vpop.f32.mrf.mxu0
  %v133 = vadd.f32 %v66, %v132
  %134 = vmatmul.bf16.gmra.mxu0 %v73
  %v135 = vpop.f32.mrf.mxu0
  %v136 = vadd.f32 %v66, %v135
  %v137 = vpop.f32.mrf.mxu0
  %v138 = vadd.f32 %v66, %v137
  %139 = vmatmul.bf16.gmra.mxu0 %v76
  %v140 = vpop.f32.mrf.mxu0
  %v141 = vadd.f32 %v66, %v140
  %v142 = vpop.f32.mrf.mxu0
  %v143 = vadd.f32 %v66, %v142
  %144 = vmatmul.bf16.gmra.mxu0 %v79
  %v145 = vpop.f32.mrf.mxu0
  %v146 = vadd.f32 %v66, %v145
  %v147 = vpop.f32.mrf.mxu0
  %v148 = vadd.f32 %v66, %v147
  %149 = vmatmul.bf16.gmra.mxu0 %v82
  %v150 = vpop.f32.mrf.mxu0
  %v151 = vadd.f32 %v66, %v150
  %v152 = vpop.f32.mrf.mxu0
  %v153 = vadd.f32 %v66, %v152
  %154 = vmatmul.bf16.gmra.mxu0 %v85
  %v155 = vpop.f32.mrf.mxu0
  %v156 = vadd.f32 %v66, %v155
  %v157 = vpop.f32.mrf.mxu0
  %v158 = vadd.f32 %v66, %v157
  %159 = vmatmul.bf16.gmra.mxu0 %v88
  %v160 = vpop.f32.mrf.mxu0
  %v161 = vadd.f32 %v66, %v160
  %v162 = vpop.f32.mrf.mxu0
  %v163 = vadd.f32 %v66, %v162
  %164 = vmatmul.bf16.gmra.mxu0 %v91
  %v165 = vpop.f32.mrf.mxu0
  %v166 = vadd.f32 %v66, %v165
  %v167 = vpop.f32.mrf.mxu0
  %v168 = vadd.f32 %v66, %v167
  %169 = vmatmul.bf16.gmra.mxu0 %v94
  %v170 = vpop.f32.mrf.mxu0
  %v171 = vadd.f32 %v66, %v170
  %v172 = vpop.f32.mrf.mxu0
  %v173 = vadd.f32 %v66, %v172
  %174 = vmatmul.bf16.gmra.mxu0 %v97
  %v175 = vpop.f32.mrf.mxu0
  %v176 = vadd.f32 %v66, %v175
  %v177 = vpop.f32.mrf.mxu0
  %v178 = vadd.f32 %v66, %v177
  %179 = vmatmul.bf16.gmra.mxu0 %v100
  %v180 = vpop.f32.mrf.mxu0
  %v181 = vadd.f32 %v66, %v180
  %v182 = vpop.f32.mrf.mxu0
  %v183 = vadd.f32 %v66, %v182
  %184 = vmatmul.bf16.gmra.mxu0 %v103
  %v185 = vpop.f32.mrf.mxu0
  %v186 = vadd.f32 %v66, %v185
  %v187 = vpop.f32.mrf.mxu0
  %v188 = vadd.f32 %v66, %v187
  %189 = vmatmul.bf16.gmra.mxu0 %v106
  %v190 = vpop.f32.mrf.mxu0
  %v191 = vadd.f32 %v66, %v190
  %v192 = vpop.f32.mrf.mxu0
  %v193 = vadd.f32 %v66, %v192
  %194 = vmatmul.bf16.gmra.mxu0 %v109
  %v195 = vpop.f32.mrf.mxu0
  %v196 = vadd.f32 %v66, %v195
  %v197 = vpop.f32.mrf.mxu0
  %v198 = vadd.f32 %v66, %v197
  %199 = vmatmul.bf16.gmra.mxu0 %v112
  %v200 = vpop.f32.mrf.mxu0
  %v201 = vadd.f32 %v66, %v200
  %v202 = vpop.f32.mrf.mxu0
  %v203 = vadd.f32 %v66, %v202
  %204 = vmatmul.bf16.gmra.mxu0 %v115
  %v205 = vpop.f32.mrf.mxu0
  %v206 = vadd.f32 %v66, %v205
  %v207 = vpop.f32.mrf.mxu0
  %v208 = vadd.f32 %v66, %v207
  %209 = vdwg.mxu0
  %v210 = vpack.c.bf16 %v131, %v131
  %v211 = vpack.c.bf16 %v133, %v133
  %v212 = vpack.c.bf16 %v136, %v136
  %v213 = vpack.c.bf16 %v138, %v138
  %v214 = vpack.c.bf16 %v141, %v141
  %v215 = vpack.c.bf16 %v143, %v143
  %v216 = vpack.c.bf16 %v146, %v146
  %v217 = vpack.c.bf16 %v148, %v148
  %v218 = vpack.c.bf16 %v151, %v151
  %v219 = vpack.c.bf16 %v153, %v153
  %v220 = vpack.c.bf16 %v156, %v156
  %v221 = vpack.c.bf16 %v158, %v158
  %v222 = vpack.c.bf16 %v161, %v161
  %v223 = vpack.c.bf16 %v163, %v163
  %v224 = vpack.c.bf16 %v166, %v166
  %v225 = vpack.c.bf16 %v168, %v168
  %v226 = vpack.c.bf16 %v171, %v171
  %v227 = vpack.c.bf16 %v173, %v173
  %v228 = vpack.c.bf16 %v176, %v176
  %v229 = vpack.c.bf16 %v178, %v178
  %v230 = vpack.c.bf16 %v181, %v181
  %v231 = vpack.c.bf16 %v183, %v183
  %v232 = vpack.c.bf16 %v186, %v186
  %v233 = vpack.c.bf16 %v188, %v188
  %v234 = vpack.c.bf16 %v191, %v191
  %v235 = vpack.c.bf16 %v193, %v193
  %v236 = vpack.c.bf16 %v196, %v196
  %v237 = vpack.c.bf16 %v198, %v198
  %v238 = vpack.c.bf16 %v201, %v201
  %v239 = vpack.c.bf16 %v203, %v203
  %v240 = vpack.c.bf16 %v206, %v206
  %v241 = vpack.c.bf16 %v208, %v208
  %vm242 = vcmask 27648
  %243 = vst.msk [vmem:[%s3] sm:$0xf] %vm242, %v210
  %244 = vst.msk [vmem:[%s3 + $0x4] sm:$0xf] %vm242, %v211
  %245 = vst.msk [vmem:[%s3 + $0x8] sm:$0xf] %vm242, %v212
  %246 = vst.msk [vmem:[%s3 + $0xc] sm:$0xf] %vm242, %v213
  %247 = vst.msk [vmem:[%s3 + $0x10] sm:$0xf] %vm242, %v214
  %248 = vst.msk [vmem:[%s3 + $0x14] sm:$0xf] %vm242, %v215
  %249 = vst.msk [vmem:[%s3 + $0x18] sm:$0xf] %vm242, %v216
  %250 = vst.msk [vmem:[%s3 + $0x1c] sm:$0xf] %vm242, %v217
  %251 = vst.msk [vmem:[%s3 + $0x20] sm:$0xf] %vm242, %v218
  %252 = vst.msk [vmem:[%s3 + $0x24] sm:$0xf] %vm242, %v219
  %253 = vst.msk [vmem:[%s3 + $0x28] sm:$0xf] %vm242, %v220
  %254 = vst.msk [vmem:[%s3 + $0x2c] sm:$0xf] %vm242, %v221
  %255 = vst.msk [vmem:[%s3 + $0x30] sm:$0xf] %vm242, %v222
  %256 = vst.msk [vmem:[%s3 + $0x34] sm:$0xf] %vm242, %v223
  %257 = vst.msk [vmem:[%s3 + $0x38] sm:$0xf] %vm242, %v224
  %258 = vst.msk [vmem:[%s3 + $0x3c] sm:$0xf] %vm242, %v225
  %259 = vst.msk [vmem:[%s3 + $0x40] sm:$0xf] %vm242, %v226
  %260 = vst.msk [vmem:[%s3 + $0x44] sm:$0xf] %vm242, %v227
  %261 = vst.msk [vmem:[%s3 + $0x48] sm:$0xf] %vm242, %v228
  %262 = vst.msk [vmem:[%s3 + $0x4c] sm:$0xf] %vm242, %v229
  %263 = vst.msk [vmem:[%s3 + $0x50] sm:$0xf] %vm242, %v230
  %264 = vst.msk [vmem:[%s3 + $0x54] sm:$0xf] %vm242, %v231
  %265 = vst.msk [vmem:[%s3 + $0x58] sm:$0xf] %vm242, %v232
  %266 = vst.msk [vmem:[%s3 + $0x5c] sm:$0xf] %vm242, %v233
  %267 = vst.msk [vmem:[%s3 + $0x60] sm:$0xf] %vm242, %v234
  %268 = vst.msk [vmem:[%s3 + $0x64] sm:$0xf] %vm242, %v235
  %269 = vst.msk [vmem:[%s3 + $0x68] sm:$0xf] %vm242, %v236
  %270 = vst.msk [vmem:[%s3 + $0x6c] sm:$0xf] %vm242, %v237
  %271 = vst.msk [vmem:[%s3 + $0x70] sm:$0xf] %vm242, %v238
  %272 = vst.msk [vmem:[%s3 + $0x74] sm:$0xf] %vm242, %v239
  %273 = vst.msk [vmem:[%s3 + $0x78] sm:$0xf] %vm242, %v240
  %274 = vst.msk [vmem:[%s3 + $0x7c] sm:$0xf] %vm242, %v241
  // Predicated region
  $region14: #{psgm_forward.5} parent=0 // pred_check
    _
  $region15: #{psgm_forward.5} parent=0 // pred_check_branch
    %276 = sbr.rel (0) target = $region17
  $region16: #{psgm_forward.5} parent=0 // pred_region
    _
  $region17: #{psgm_forward.5} parent=0 // pred_fallthru
    _
  // Predicated region
  $region18: #{psgm_forward.5} parent=0 // pred_check
    _
  $region19: #{psgm_forward.5} parent=0 // pred_check_branch
    %278 = sbr.rel (0) target = $region21
  $region20: #{psgm_forward.5} parent=0 // pred_region
    _
  $region21: #{psgm_forward.5} parent=0 // pred_fallthru
    _

// kernel: psgm_forward.7
$region0: #{psgm_forward.7}
  #allocation0 [shape = 'u32[]', space=smem, size = 0x4, offset = 0x4, fixed_abs, tag = 'smem constant byte address 0x4 - core index']
  #allocation1 [shape = 'u32[72,128]{1,0:T(1,128)}', space=vmem, size = 0x9000, scoped, tag = 'internal scratch']
  #allocation2 [shape = 'f32[1,32]{1,0:T(1,128)}', space=vmem, size = 0x200, scoped, tag = 'scratch operand']
  #allocation3 [shape = 'f32[1,32]{1,0:T(1,128)}', space=vmem, size = 0x200, scoped, tag = 'scratch operand']
  %s0 = inlined_call_operand.vmem [shape: bf16[2,128,2], index: 0, kind: input, shape index: {}]
  %s1 = inlined_call_operand.vmem [shape: bf16[2,2,32], index: 1, kind: input, shape index: {}]
  %s2 = inlined_call_operand.vmem [shape: f32[2,1,32], index: 2, kind: output, shape index: {0}]
  %s3 = inlined_call_operand.vmem [shape: f32[2,1,32], index: 3, kind: output, shape index: {1}]
  %4 = xla_tuple %s2, %s3
  %s5 = sld [smem:[#allocation0]]
  $region57: #{psgm_forward.7} parent=0
    _
  %s7 = ssub.s32 1, %s5
  %s8 = scalar_select 0, %s7, %s5
  loop: start=0, step=1, limit=4
  $region2: #{psgm_forward.7} parent=0 // loop_pre_header
    _
  $region3: #{psgm_forward.7} parent=0 // loop_header
    %s10 = sphi 0, %s14
    %p11 = scmp.ge.s32.totalorder %s10, 4
    %s17 = sphi 0, %s36
    %s18 = sphi 0, %s32
    %s19 = sphi 0, %s28
    %s20 = sphi 0, %s17
    %s21 = sphi 0, %s18
    %s22 = sphi 0, %s19
    %s23 = sphi 0, %s20
    %s24 = sphi 0, %s21
    %s25 = sphi 0, %s22
    %s41 = sphi 0, %s43
    %s44 = sphi 0, %s41
    %s45 = sphi 0, %s44
    %s61 = sphi 0, %s45
    %s69 = sphi 0, %s71
    %s72 = sphi 0, %s69
    %s73 = sphi 0, %s72
    %s89 = sphi 0, %s73
    %s97 = sphi 0, %s99
    %s100 = sphi 0, %s97
    %s101 = sphi 0, %s100
    %s117 = sphi 0, %s101
    %s125 = sphi 0, %s127
    %s128 = sphi 0, %s125
    %s129 = sphi 0, %s128
    %s145 = sphi 0, %s129
  $region4: #{psgm_forward.7} parent=0 // loop_header_branch
    %13 = sbr.rel (%p11) target = $region8
  $region5: #{psgm_forward.7} parent=0 // loop_body
    %s15 = ssub.s32 %s10, 1
    %s16 = ssub.s32 %s10, 2
    %s26 = sadd.s32 1, %s19
    %p27 = scmp.ge.s32.totalorder %s26, 1
    %s28 = scalar_select %p27, 0, %s26
    %s29 = sadd.s32 1, %s18
    %s30 = scalar_select %p27, %s29, %s18
    %p31 = scmp.ge.s32.totalorder %s30, 1
    %s32 = scalar_select %p31, 0, %s30
    %s33 = sadd.s32 1, %s17
    %s34 = scalar_select %p31, %s33, %s17
    %p35 = scmp.ge.s32.totalorder %s34, 2
    %s36 = scalar_select %p35, 0, %s34
    %s37 = ssub.s32 %s17, %s36
    %s38 = ssub.s32 %s19, %s28
    %s39 = sor.u32 %s37, %s38
    %p40 = scmp.eq.s32.totalorder %s39, 0
    %s42 = sadd.s32 %s41, 1
    %s43 = scalar_select %p40, %s41, %s42
    %p46 = pneg %p40
    %p47 = scmp.eq.s32.totalorder %s10, 1
    %p48 = por %p46, %p47
    %p49 = scmp.ne.s32.totalorder %s41, %s44
    %p50 = scmp.eq.s32.totalorder %s10, 0
    %p51 = por %p49, %p50
    %p52 = scmp.ne.s32.totalorder %s41, %s44
    %p53 = scmp.eq.s32.totalorder %s15, 1
    %p54 = por %p52, %p53
    %p55 = scmp.ne.s32.totalorder %s44, %s45
    %p56 = scmp.eq.s32.totalorder %s15, 0
    %p57 = por %p55, %p56
    %p58 = scmp.ne.s32.totalorder %s44, %s45
    %p59 = scmp.eq.s32.totalorder %s16, 1
    %p60 = por %p58, %p59
    %p62 = scmp.ne.s32.totalorder %s45, %s61
    %p63 = scmp.eq.s32.totalorder %s16, 0
    %p64 = por %p62, %p63
    %s65 = ssub.s32 %s17, %s36
    %s66 = ssub.s32 %s18, %s32
    %s67 = sor.u32 %s65, %s66
    %p68 = scmp.eq.s32.totalorder %s67, 0
    %s70 = sadd.s32 %s69, 1
    %s71 = scalar_select %p68, %s69, %s70
    %p74 = pneg %p68
    %p75 = scmp.eq.s32.totalorder %s10, 1
    %p76 = por %p74, %p75
    %p77 = scmp.ne.s32.totalorder %s69, %s72
    %p78 = scmp.eq.s32.totalorder %s10, 0
    %p79 = por %p77, %p78
    %p80 = scmp.ne.s32.totalorder %s69, %s72
    %p81 = scmp.eq.s32.totalorder %s15, 1
    %p82 = por %p80, %p81
    %p83 = scmp.ne.s32.totalorder %s72, %s73
    %p84 = scmp.eq.s32.totalorder %s15, 0
    %p85 = por %p83, %p84
    %p86 = scmp.ne.s32.totalorder %s72, %s73
    %p87 = scmp.eq.s32.totalorder %s16, 1
    %p88 = por %p86, %p87
    %p90 = scmp.ne.s32.totalorder %s73, %s89
    %p91 = scmp.eq.s32.totalorder %s16, 0
    %p92 = por %p90, %p91
    %s93 = ssub.s32 %s17, %s36
    %s94 = ssub.s32 %s18, %s32
    %s95 = sor.u32 %s93, %s94
    %p96 = scmp.eq.s32.totalorder %s95, 0
    %s98 = sadd.s32 %s97, 1
    %s99 = scalar_select %p96, %s97, %s98
    %p102 = pneg %p96
    %p103 = scmp.eq.s32.totalorder %s10, 1
    %p104 = por %p102, %p103
    %p105 = scmp.ne.s32.totalorder %s97, %s100
    %p106 = scmp.eq.s32.totalorder %s10, 0
    %p107 = por %p105, %p106
    %p108 = scmp.ne.s32.totalorder %s97, %s100
    %p109 = scmp.eq.s32.totalorder %s15, 1
    %p110 = por %p108, %p109
    %p111 = scmp.ne.s32.totalorder %s100, %s101
    %p112 = scmp.eq.s32.totalorder %s15, 0
    %p113 = por %p111, %p112
    %p114 = scmp.ne.s32.totalorder %s100, %s101
    %p115 = scmp.eq.s32.totalorder %s16, 1
    %p116 = por %p114, %p115
    %p118 = scmp.ne.s32.totalorder %s101, %s117
    %p119 = scmp.eq.s32.totalorder %s16, 0
    %p120 = por %p118, %p119
    %s121 = ssub.s32 %s17, %s36
    %s122 = ssub.s32 %s18, %s32
    %s123 = sor.u32 %s121, %s122
    %p124 = scmp.eq.s32.totalorder %s123, 0
    %s126 = sadd.s32 %s125, 1
    %s127 = scalar_select %p124, %s125, %s126
    %p130 = pneg %p124
    %p131 = scmp.eq.s32.totalorder %s10, 1
    %p132 = por %p130, %p131
    %p133 = scmp.ne.s32.totalorder %s125, %s128
    %p134 = scmp.eq.s32.totalorder %s10, 0
    %p135 = por %p133, %p134
    %p136 = scmp.ne.s32.totalorder %s125, %s128
    %p137 = scmp.eq.s32.totalorder %s15, 1
    %p138 = por %p136, %p137
    %p139 = scmp.ne.s32.totalorder %s128, %s129
    %p140 = scmp.eq.s32.totalorder %s15, 0
    %p141 = por %p139, %p140
    %p142 = scmp.ne.s32.totalorder %s128, %s129
    %p143 = scmp.eq.s32.totalorder %s16, 1
    %p144 = por %p142, %p143
    %p146 = scmp.ne.s32.totalorder %s129, %s145
    %p147 = scmp.eq.s32.totalorder %s16, 0
    %p148 = por %p146, %p147
    %p149 = scmp.le.s32.totalorder 1, %s10
    %p150 = scmp.lt.s32.totalorder %s10, 3
    %p151 = pnand %p149, %p150
    %p152 = pneg %p151
    // Predicated region
    $region9: #{psgm_forward.7} parent=5 // pred_check
      _
    $region10: #{psgm_forward.7} parent=5 // pred_check_branch
      %154 = sbr.rel (%p151) target = $region12
    $region11: #{psgm_forward.7} parent=5 // pred_region
      %s155 = ssub.s32 %s10, 1
    $region12: #{psgm_forward.7} parent=5 // pred_fallthru
      _
    %p156 = scmp.lt.s32.totalorder %s10, 2
    // Predicated region
    $region13: #{psgm_forward.7} parent=5 // pred_check
      %p157 = pneg %p156
    $region14: #{psgm_forward.7} parent=5 // pred_check_branch
      %159 = sbr.rel (%p157) target = $region16
    $region15: #{psgm_forward.7} parent=5 // pred_region
      // Predicated region
      $region17: #{psgm_forward.7} parent=15 // pred_check
        %p160 = pneg %p51
      $region18: #{psgm_forward.7} parent=15 // pred_check_branch
        %162 = sbr.rel (%p160) target = $region20
      $region19: #{psgm_forward.7} parent=15 // pred_region
        %s163 = smul.u32 16, %s19
        %p164 = scmp.lt.s32.totalorder %s17, 1
        %s165 = scalar_select %p164, %s17, 1
        %p166 = scmp.lt.s32.totalorder %s163, 15
        %s167 = scalar_select %p166, %s163, 15
        %s168 = smul.addr %s165, 16
        %s169 = sadd.s32 %s167, %s168
        %s170 = smul.addr %s169, 4
        %s171 = scalar_lea.vmem %s0, %s170
        %s172 = smul.u32 16, %s19
      $region20: #{psgm_forward.7} parent=15 // pred_fallthru
        _
      // Predicated region
      $region21: #{psgm_forward.7} parent=15 // pred_check
        %p173 = pneg %p79
      $region22: #{psgm_forward.7} parent=15 // pred_check_branch
        %175 = sbr.rel (%p173) target = $region24
      $region23: #{psgm_forward.7} parent=15 // pred_region
        %p176 = scmp.lt.s32.totalorder %s17, 1
        %s177 = scalar_select %p176, %s17, 1
        %p178 = scmp.lt.s32.totalorder %s18, 0
        %s179 = scalar_select %p178, %s18, 0
        %s180 = sadd.s32 %s179, %s177
        %s181 = scalar_lea.vmem %s1, %s180
      $region24: #{psgm_forward.7} parent=15 // pred_fallthru
        _
    $region16: #{psgm_forward.7} parent=5 // pred_fallthru
      _
    %p182 = scmp.le.s32.totalorder 1, %s10
    %p183 = scmp.lt.s32.totalorder %s10, 3
    %p184 = pnand %p182, %p183
    %p185 = pneg %p184
    // Predicated region
    $region25: #{psgm_forward.7} parent=5 // pred_check
      _
    $region26: #{psgm_forward.7} parent=5 // pred_check_branch
      %187 = sbr.rel (%p184) target = $region28
    $region27: #{psgm_forward.7} parent=5 // pred_region
      %s188 = ssub.s32 %s10, 1
      %s189 = smul.u32 16, %s22
      %p190 = scmp.lt.s32.totalorder %s20, 1
      %s191 = scalar_select %p190, %s20, 1
      %p192 = scmp.lt.s32.totalorder %s189, 15
      %s193 = scalar_select %p192, %s189, 15
      %s194 = smul.addr %s191, 16
      %s195 = sadd.s32 %s193, %s194
      %s196 = smul.addr %s195, 4
      %s197 = scalar_lea.vmem %s0, %s196
      %p198 = pneg %p57
      %p199 = pneg %p54
      %p200 = scmp.lt.s32.totalorder %s20, 1
      %s201 = scalar_select %p200, %s20, 1
      %p202 = scmp.lt.s32.totalorder %s21, 0
      %s203 = scalar_select %p202, %s21, 0
      %s204 = sadd.s32 %s203, %s201
      %s205 = scalar_lea.vmem %s1, %s204
      %p206 = pneg %p85
      %p207 = pneg %p82
      %p208 = pneg %p113
      %p209 = pneg %p110
      %p210 = scmp.lt.s32.totalorder %s20, 1
      %s211 = scalar_select %p210, %s20, 1
      %p212 = scmp.lt.s32.totalorder %s21, 0
      %s213 = scalar_select %p212, %s21, 0
      %s214 = sadd.s32 %s213, %s211
      %s215 = scalar_lea.vmem %s2, %s214
      %p216 = pneg %p141
      %p217 = pneg %p138
      %p218 = scmp.lt.s32.totalorder %s20, 1
      %s219 = scalar_select %p218, %s20, 1
      %p220 = scmp.lt.s32.totalorder %s21, 0
      %s221 = scalar_select %p220, %s21, 0
      %s222 = sadd.s32 %s221, %s219
      %s223 = scalar_lea.vmem %s3, %s222
      %s224 = smul.u32 16, %s22
      %p225 = scmp.lt.s32.totalorder %s20, 1
      %s226 = scalar_select %p225, %s20, 1
      %p227 = scmp.lt.s32.totalorder %s224, 15
      %s228 = scalar_select %p227, %s224, 15
      %s229 = smul.addr %s226, 16
      %s230 = sadd.s32 %s228, %s229
      %s231 = smul.addr %s230, 4
      %s232 = scalar_lea.vmem %s0, %s231
      %s233 = smul.u32 16, %s22
      %p234 = scmp.lt.s32.totalorder %s20, 1
      %s235 = scalar_select %p234, %s20, 1
      %p236 = scmp.lt.s32.totalorder %s21, 0
      %s237 = scalar_select %p236, %s21, 0
      %s238 = sadd.s32 %s237, %s235
      %s239 = scalar_lea.vmem %s1, %s238
      %p240 = scmp.lt.s32.totalorder %s20, 1
      %s241 = scalar_select %p240, %s20, 1
      %p242 = scmp.lt.s32.totalorder %s21, 0
      %s243 = scalar_select %p242, %s21, 0
      %s244 = sadd.s32 %s243, %s241
      %s245 = scalar_lea.vmem %s2, %s244
      %p246 = scmp.lt.s32.totalorder %s20, 1
      %s247 = scalar_select %p246, %s20, 1
      %p248 = scmp.lt.s32.totalorder %s21, 0
      %s249 = scalar_select %p248, %s21, 0
      %s250 = sadd.s32 %s249, %s247
      %s251 = scalar_lea.vmem %s3, %s250
      %p253 = scmp.eq.s32.totalorder %s22, 0
      // Predicated region
      $region29: #{psgm_forward.7} parent=27 // pred_check
        %p254 = pneg %p253
      $region30: #{psgm_forward.7} parent=27 // pred_check_branch
        %256 = sbr.rel (%p254) target = $region32
      $region31: #{psgm_forward.7} parent=27 // pred_region
        %vm257 = vcmask 253952
        %258 = vst.msk [vmem:[#allocation2] sm:$0x1] %vm257, -inf
        %259 = vst.msk [vmem:[#allocation3] sm:$0x1] %vm257, 0.0
      $region32: #{psgm_forward.7} parent=27 // pred_fallthru
        _
      %v260 = vld [vmem:[%s232] sm:$0xf]
      %v261 = vld [vmem:[%s232 + $0x4] sm:$0xf]
      %v262 = vld [vmem:[%s232 + $0x8] sm:$0xf]
      %v263 = vld [vmem:[%s232 + $0xc] sm:$0xf]
      %v264 = vld [vmem:[%s232 + $0x10] sm:$0xf]
      %v265 = vld [vmem:[%s232 + $0x14] sm:$0xf]
      %v266 = vld [vmem:[%s232 + $0x18] sm:$0xf]
      %v267 = vld [vmem:[%s232 + $0x1c] sm:$0xf]
      %v268 = vld [vmem:[%s232 + $0x20] sm:$0xf]
      %v269 = vld [vmem:[%s232 + $0x24] sm:$0xf]
      %v270 = vld [vmem:[%s232 + $0x28] sm:$0xf]
      %v271 = vld [vmem:[%s232 + $0x2c] sm:$0xf]
      %v272 = vld [vmem:[%s232 + $0x30] sm:$0xf]
      %v273 = vld [vmem:[%s232 + $0x34] sm:$0xf]
      %v274 = vld [vmem:[%s232 + $0x38] sm:$0xf]
      %v275 = vld [vmem:[%s232 + $0x3c] sm:$0xf]
      %v276 = vld [vmem:[%s239] sm:$0x1]
      %v293 = vunpack.c.l.b16 %v260
      %v294 = vunpack.c.l.b16 %v261
      %v295 = vunpack.c.l.b16 %v262
      %v296 = vunpack.c.l.b16 %v263
      %v297 = vunpack.c.l.b16 %v264
      %v298 = vunpack.c.l.b16 %v265
      %v299 = vunpack.c.l.b16 %v266
      %v300 = vunpack.c.l.b16 %v267
      %v301 = vunpack.c.l.b16 %v268
      %v302 = vunpack.c.l.b16 %v269
      %v303 = vunpack.c.l.b16 %v270
      %v304 = vunpack.c.l.b16 %v271
      %v305 = vunpack.c.l.b16 %v272
      %v306 = vunpack.c.l.b16 %v273
      %v307 = vunpack.c.l.b16 %v274
      %v308 = vunpack.c.l.b16 %v275
      %v309 = vpack.c.b16 %v294, %v293
      %v310 = vpack.c.b16 %v296, %v295
      %v311 = vpack.c.b16 %v298, %v297
      %v312 = vpack.c.b16 %v300, %v299
      %v313 = vpack.c.b16 %v302, %v301
      %v314 = vpack.c.b16 %v304, %v303
      %v315 = vpack.c.b16 %v306, %v305
      %v316 = vpack.c.b16 %v308, %v307
      %vm317 = vcmask 15360
      %v319 = vsel %vm317, %v309, 0
      %v322 = vsel %vm317, %v310, 0
      %v325 = vsel %vm317, %v311, 0
      %v328 = vsel %vm317, %v312, 0
      %v331 = vsel %vm317, %v313, 0
      %v334 = vsel %vm317, %v314, 0
      %v337 = vsel %vm317, %v315, 0
      %v340 = vsel %vm317, %v316, 0
      %vm342 = vcmask 1040384
      %v344 = vsel %vm342, %v276, 0
      %346 = vmatpush.bf16.msra.mxu0 0
      %347 = vmatpush.bf16.msra.mxu0 0
      %348 = vmatpush.bf16.msra.mxu0 0
      %349 = vmatpush.bf16.msra.mxu0 0
      %350 = vmatpush.bf16.msra.mxu0 0
      %351 = vmatpush.bf16.msra.mxu0 0
      %352 = vmatpush.bf16.msra.mxu0 0
      %353 = vmatpush.bf16.msra.mxu0 %v344
      %354 = vmatmul.bf16.gmra.mxu0 %v319
      %v355 = vpop.f32.mrf.mxu0
      %v356 = vadd.f32 0.0, %v355
      %v357 = vpop.f32.mrf.mxu0
      %v358 = vadd.f32 0.0, %v357
      %359 = vmatmul.bf16.gmra.mxu0 %v322
      %v360 = vpop.f32.mrf.mxu0
      %v361 = vadd.f32 0.0, %v360
      %v362 = vpop.f32.mrf.mxu0
      %v363 = vadd.f32 0.0, %v362
      %364 = vmatmul.bf16.gmra.mxu0 %v325
      %v365 = vpop.f32.mrf.mxu0
      %v366 = vadd.f32 0.0, %v365
      %v367 = vpop.f32.mrf.mxu0
      %v368 = vadd.f32 0.0, %v367
      %369 = vmatmul.bf16.gmra.mxu0 %v328
      %v370 = vpop.f32.mrf.mxu0
      %v371 = vadd.f32 0.0, %v370
      %v372 = vpop.f32.mrf.mxu0
      %v373 = vadd.f32 0.0, %v372
      %374 = vmatmul.bf16.gmra.mxu0 %v331
      %v375 = vpop.f32.mrf.mxu0
      %v376 = vadd.f32 0.0, %v375
      %v377 = vpop.f32.mrf.mxu0
      %v378 = vadd.f32 0.0, %v377
      %379 = vmatmul.bf16.gmra.mxu0 %v334
      %v380 = vpop.f32.mrf.mxu0
      %v381 = vadd.f32 0.0, %v380
      %v382 = vpop.f32.mrf.mxu0
      %v383 = vadd.f32 0.0, %v382
      %384 = vmatmul.bf16.gmra.mxu0 %v337
      %v385 = vpop.f32.mrf.mxu0
      %v386 = vadd.f32 0.0, %v385
      %v387 = vpop.f32.mrf.mxu0
      %v388 = vadd.f32 0.0, %v387
      %389 = vmatmul.bf16.gmra.mxu0 %v340
      %v390 = vpop.f32.mrf.mxu0
      %v391 = vadd.f32 0.0, %v390
      %v392 = vpop.f32.mrf.mxu0
      %v393 = vadd.f32 0.0, %v392
      %394 = vdwg.mxu0
      %vm395 = vcmask 261120
      %v396 = vsel %vm395, %v356, -inf
      %v397 = vsel %vm395, %v358, -inf
      %v398 = vsel %vm395, %v361, -inf
      %v399 = vsel %vm395, %v363, -inf
      %v400 = vsel %vm395, %v366, -inf
      %v401 = vmax.f32 %v396, %v400
      %v402 = vsel %vm395, %v368, -inf
      %v403 = vmax.f32 %v397, %v402
      %v404 = vsel %vm395, %v371, -inf
      %v405 = vmax.f32 %v398, %v404
      %v406 = vsel %vm395, %v373, -inf
      %v407 = vmax.f32 %v399, %v406
      %v408 = vsel %vm395, %v376, -inf
      %v409 = vmax.f32 %v401, %v408
      %v410 = vsel %vm395, %v378, -inf
      %v411 = vmax.f32 %v403, %v410
      %v412 = vsel %vm395, %v381, -inf
      %v413 = vmax.f32 %v405, %v412
      %v414 = vsel %vm395, %v383, -inf
      %v415 = vmax.f32 %v407, %v414
      %v416 = vsel %vm395, %v386, -inf
      %v417 = vmax.f32 %v409, %v416
      %v418 = vsel %vm395, %v388, -inf
      %v419 = vmax.f32 %v411, %v418
      %v420 = vsel %vm395, %v391, -inf
      %v421 = vmax.f32 %v413, %v420
      %v422 = vsel %vm395, %v393, -inf
      %v423 = vmax.f32 %v415, %v422
      %v424 = vmax.f32 %v417, %v419
      %v425 = vmax.f32 %v421, %v423
      %v426 = vmax.f32 %v424, %v425
      %v427 = vrot.slane %v426, 4
      %v428 = vmax.f32 %v426, %v427
      %v429 = vrot.slane %v428, 2
      %v430 = vmax.f32 %v428, %v429
      %v431 = vrot.slane %v430, 1
      %v432 = vmax.f32 %v430, %v431
      %v433 = vld [vmem:[#allocation2] sm:$0x1]
      %v434 = vmax.f32 %v433, %v432
      %v435 = vsub.f32 %v433, %v434
      %v436 = vmul.f32 %v435, 1.442695
      %v437 = vpow.pop %v436
      %v438 = vld [vmem:[#allocation3] sm:$0x1]
      %v439 = vmul.f32 %v438, %v437
      %v441 = vperm.slane %v434, 0
      %v443 = vsub.f32 %v356, %v441
      %v444 = vsub.f32 %v358, %v441
      %v445 = vsub.f32 %v361, %v441
      %v446 = vsub.f32 %v363, %v441
      %v447 = vsub.f32 %v366, %v441
      %v448 = vsub.f32 %v368, %v441
      %v449 = vsub.f32 %v371, %v441
      %v450 = vsub.f32 %v373, %v441
      %v451 = vsub.f32 %v376, %v441
      %v452 = vsub.f32 %v378, %v441
      %v453 = vsub.f32 %v381, %v441
      %v454 = vsub.f32 %v383, %v441
      %v455 = vsub.f32 %v386, %v441
      %v456 = vsub.f32 %v388, %v441
      %v457 = vsub.f32 %v391, %v441
      %v458 = vsub.f32 %v393, %v441
      %v459 = vmul.f32 %v443, 1.442695
      %v460 = vpow.pop %v459
      %v461 = vmul.f32 %v444, 1.442695
      %v462 = vpow.pop %v461
      %v463 = vmul.f32 %v445, 1.442695
      %v464 = vpow.pop %v463
      %v465 = vmul.f32 %v446, 1.442695
      %v466 = vpow.pop %v465
      %v467 = vmul.f32 %v447, 1.442695
      %v468 = vpow.pop %v467
      %v469 = vmul.f32 %v448, 1.442695
      %v470 = vpow.pop %v469
      %v471 = vmul.f32 %v449, 1.442695
      %v472 = vpow.pop %v471
      %v473 = vmul.f32 %v450, 1.442695
      %v474 = vpow.pop %v473
      %v475 = vmul.f32 %v451, 1.442695
      %v476 = vpow.pop %v475
      %v477 = vmul.f32 %v452, 1.442695
      %v478 = vpow.pop %v477
      %v479 = vmul.f32 %v453, 1.442695
      %v480 = vpow.pop %v479
      %v481 = vmul.f32 %v454, 1.442695
      %v482 = vpow.pop %v481
      %v483 = vmul.f32 %v455, 1.442695
      %v484 = vpow.pop %v483
      %v485 = vmul.f32 %v456, 1.442695
      %v486 = vpow.pop %v485
      %v487 = vmul.f32 %v457, 1.442695
      %v488 = vpow.pop %v487
      %v489 = vmul.f32 %v458, 1.442695
      %v490 = vpow.pop %v489
      %v491 = vsel %vm395, %v460, 0.0
      %v492 = vsel %vm395, %v462, 0.0
      %v493 = vadd.f32 %v491, %v492
      %v494 = vsel %vm395, %v464, 0.0
      %v495 = vadd.f32 %v493, %v494
      %v496 = vsel %vm395, %v466, 0.0
      %v497 = vadd.f32 %v495, %v496
      %v498 = vsel %vm395, %v468, 0.0
      %v499 = vadd.f32 %v497, %v498
      %v500 = vsel %vm395, %v470, 0.0
      %v501 = vadd.f32 %v499, %v500
      %v502 = vsel %vm395, %v472, 0.0
      %v503 = vadd.f32 %v501, %v502
      %v504 = vsel %vm395, %v474, 0.0
      %v505 = vadd.f32 %v503, %v504
      %v506 = vsel %vm395, %v476, 0.0
      %v507 = vadd.f32 %v505, %v506
      %v508 = vsel %vm395, %v478, 0.0
      %v509 = vadd.f32 %v507, %v508
      %v510 = vsel %vm395, %v480, 0.0
      %v511 = vadd.f32 %v509, %v510
      %v512 = vsel %vm395, %v482, 0.0
      %v513 = vadd.f32 %v511, %v512
      %v514 = vsel %vm395, %v484, 0.0
      %v515 = vadd.f32 %v513, %v514
      %v516 = vsel %vm395, %v486, 0.0
      %v517 = vadd.f32 %v515, %v516
      %v518 = vsel %vm395, %v488, 0.0
      %v519 = vadd.f32 %v517, %v518
      %v520 = vsel %vm395, %v490, 0.0
      %v521 = vadd.f32 %v519, %v520
      %v522 = vrot.slane %v521, 4
      %v523 = vadd.f32 %v521, %v522
      %v524 = vrot.slane %v523, 2
      %v525 = vadd.f32 %v523, %v524
      %v526 = vrot.slane %v525, 1
      %v527 = vadd.f32 %v525, %v526
      %v528 = vadd.f32 %v439, %v527
      %vm529 = vcmask 253952
      %530 = vst.msk [vmem:[#allocation3] sm:$0x1] %vm529, %v528
      %531 = vst.msk [vmem:[#allocation2] sm:$0x1] %vm529, %v434
      // Predicated region
      $region33: #{psgm_forward.7} parent=27 // pred_check
        %p532 = pneg %p253
      $region34: #{psgm_forward.7} parent=27 // pred_check_branch
        %534 = sbr.rel (%p532) target = $region36
      $region35: #{psgm_forward.7} parent=27 // pred_region
        %v535 = vld [vmem:[#allocation2] sm:$0x1]
        %536 = vst.msk [vmem:[%s245] sm:$0x1] %vm529, %v535
        %v537 = vld [vmem:[#allocation3] sm:$0x1]
        %v538 = vrcp.pop %v537
        %v539 = vmul.f32 %v537, %v538
        %v540 = vsub.f32 1.0, %v539
        %v541 = vmul.f32 %v538, %v540
        %v542 = vadd.f32 %v538, %v541
        %vm543 = vweird.f32 %v537
        %vm544 = vweird.f32 %v538
        %vm545 = vmor %vm543, %vm544
        %v546 = vsel %vm545, %v538, %v542
        %v547 = vand.u32 2147483647, %v537
        %vm548 = vcmp.eq.f32.partialorder %v547, 8.507059e+37
        %v549 = vand.u32 %v537, 2147483648
        %v550 = vor.u32 1.1754944e-38, %v549
        %v551 = vsel %vm548, %v550, %v546
        %552 = vst.msk [vmem:[%s251] sm:$0x1] %vm529, %v551
      $region36: #{psgm_forward.7} parent=27 // pred_fallthru
        _
      %p553 = scmp.lt.s32.totalorder %s20, 1
      %s554 = scalar_select %p553, %s20, 1
      %p555 = scmp.lt.s32.totalorder %s21, 0
      %s556 = scalar_select %p555, %s21, 0
      %s557 = sadd.s32 %s556, %s554
      %s558 = scalar_lea.vmem %s2, %s557
      %p559 = scmp.lt.s32.totalorder %s20, 1
      %s560 = scalar_select %p559, %s20, 1
      %p561 = scmp.lt.s32.totalorder %s21, 0
      %s562 = scalar_select %p561, %s21, 0
      %s563 = sadd.s32 %s562, %s560
      %s564 = scalar_lea.vmem %s3, %s563
      // Predicated region
      $region37: #{psgm_forward.7} parent=27 // pred_check
        %p565 = pneg %p110
      $region38: #{psgm_forward.7} parent=27 // pred_check_branch
        %567 = sbr.rel (%p565) target = $region40
      $region39: #{psgm_forward.7} parent=27 // pred_region
        _
      $region40: #{psgm_forward.7} parent=27 // pred_fallthru
        _
      // Predicated region
      $region41: #{psgm_forward.7} parent=27 // pred_check
        %p568 = pneg %p138
      $region42: #{psgm_forward.7} parent=27 // pred_check_branch
        %570 = sbr.rel (%p568) target = $region44
      $region43: #{psgm_forward.7} parent=27 // pred_region
        _
      $region44: #{psgm_forward.7} parent=27 // pred_fallthru
        _
    $region28: #{psgm_forward.7} parent=5 // pred_fallthru
      _
    %p571 = scmp.le.s32.totalorder 2, %s10
    // Predicated region
    $region45: #{psgm_forward.7} parent=5 // pred_check
      %p572 = pneg %p571
    $region46: #{psgm_forward.7} parent=5 // pred_check_branch
      %574 = sbr.rel (%p572) target = $region48
    $region47: #{psgm_forward.7} parent=5 // pred_region
      %s575 = ssub.s32 %s10, 2
      // Predicated region
      $region49: #{psgm_forward.7} parent=47 // pred_check
        %p576 = pneg %p116
      $region50: #{psgm_forward.7} parent=47 // pred_check_branch
        %578 = sbr.rel (%p576) target = $region52
      $region51: #{psgm_forward.7} parent=47 // pred_region
        %p579 = scmp.lt.s32.totalorder %s23, 1
        %s580 = scalar_select %p579, %s23, 1
        %p581 = scmp.lt.s32.totalorder %s24, 0
        %s582 = scalar_select %p581, %s24, 0
        %s583 = sadd.s32 %s582, %s580
        %s584 = scalar_lea.vmem %s2, %s583
      $region52: #{psgm_forward.7} parent=47 // pred_fallthru
        _
      // Predicated region
      $region53: #{psgm_forward.7} parent=47 // pred_check
        %p585 = pneg %p144
      $region54: #{psgm_forward.7} parent=47 // pred_check_branch
        %587 = sbr.rel (%p585) target = $region56
      $region55: #{psgm_forward.7} parent=47 // pred_region
        %p588 = scmp.lt.s32.totalorder %s23, 1
        %s589 = scalar_select %p588, %s23, 1
        %p590 = scmp.lt.s32.totalorder %s24, 0
        %s591 = scalar_select %p590, %s24, 0
        %s592 = sadd.s32 %s591, %s589
        %s593 = scalar_lea.vmem %s3, %s592
      $region56: #{psgm_forward.7} parent=47 // pred_fallthru
        _
    $region48: #{psgm_forward.7} parent=5 // pred_fallthru
      _
  $region6: #{psgm_forward.7} parent=0 // loop_footer
    %s14 = sadd.s32 1, %s10
  $region7: #{psgm_forward.7} parent=0 // loop_footer_branch
    %9 = sbr.rel target = $region3
  $region8: #{psgm_forward.7} parent=0 // loop_exit
    _

// kernel: psgm_forward.8
$region0: #{psgm_forward.8}
  #allocation0 [shape = 'u32[]', space=smem, size = 0x4, offset = 0x4, fixed_abs, tag = 'smem constant byte address 0x4 - core index']
  #allocation1 [shape = 'u32[72,128]{1,0:T(1,128)}', space=vmem, size = 0x9000, scoped, tag = 'internal scratch']
  #allocation2 [shape = 'f32[128,2]{1,0:T(8,128)}', space=vmem, size = 0x10000, scoped, tag = 'scratch operand']
  %s0 = inlined_call_operand.vmem [shape: bf16[2,128,2], index: 0, kind: input, shape index: {}]
  %s1 = inlined_call_operand.vmem [shape: bf16[2,2,32], index: 1, kind: input, shape index: {}]
  %s2 = inlined_call_operand.vmem [shape: bf16[2,32,2], index: 2, kind: input, shape index: {}]
  %s3 = inlined_call_operand.vmem [shape: f32[2,1,32], index: 3, kind: input, shape index: {}]
  %s4 = inlined_call_operand.vmem [shape: f32[2,1,32], index: 4, kind: input, shape index: {}]
  %s5 = inlined_call_operand.vmem [shape: bf16[2,128,2], index: 5, kind: output, shape index: {}]
  %s6 = sld [smem:[#allocation0]]
  $region61: #{psgm_forward.8} parent=0
    _
  %s8 = ssub.s32 1, %s6
  %s9 = scalar_select 0, %s8, %s6
  loop: start=0, step=1, limit=4
  $region2: #{psgm_forward.8} parent=0 // loop_pre_header
    _
  $region3: #{psgm_forward.8} parent=0 // loop_header
    %s11 = sphi 0, %s15
    %p12 = scmp.ge.s32.totalorder %s11, 4
    %s18 = sphi 0, %s37
    %s19 = sphi 0, %s33
    %s20 = sphi 0, %s29
    %s21 = sphi 0, %s18
    %s22 = sphi 0, %s19
    %s23 = sphi 0, %s20
    %s24 = sphi 0, %s21
    %s25 = sphi 0, %s22
    %s26 = sphi 0, %s23
    %s42 = sphi 0, %s44
    %s45 = sphi 0, %s42
    %s46 = sphi 0, %s45
    %s62 = sphi 0, %s46
    %s70 = sphi 0, %s72
    %s73 = sphi 0, %s70
    %s74 = sphi 0, %s73
    %s90 = sphi 0, %s74
    %s98 = sphi 0, %s100
    %s101 = sphi 0, %s98
    %s102 = sphi 0, %s101
    %s118 = sphi 0, %s102
    %s126 = sphi 0, %s128
    %s129 = sphi 0, %s126
    %s130 = sphi 0, %s129
    %s146 = sphi 0, %s130
    %s154 = sphi 0, %s156
    %s157 = sphi 0, %s154
    %s158 = sphi 0, %s157
    %s174 = sphi 0, %s158
    %s182 = sphi 0, %s184
    %s185 = sphi 0, %s182
    %s186 = sphi 0, %s185
    %s202 = sphi 0, %s186
  $region4: #{psgm_forward.8} parent=0 // loop_header_branch
    %14 = sbr.rel (%p12) target = $region8
  $region5: #{psgm_forward.8} parent=0 // loop_body
    %s16 = ssub.s32 %s11, 1
    %s17 = ssub.s32 %s11, 2
    %s27 = sadd.s32 1, %s20
    %p28 = scmp.ge.s32.totalorder %s27, 1
    %s29 = scalar_select %p28, 0, %s27
    %s30 = sadd.s32 1, %s19
    %s31 = scalar_select %p28, %s30, %s19
    %p32 = scmp.ge.s32.totalorder %s31, 1
    %s33 = scalar_select %p32, 0, %s31
    %s34 = sadd.s32 1, %s18
    %s35 = scalar_select %p32, %s34, %s18
    %p36 = scmp.ge.s32.totalorder %s35, 2
    %s37 = scalar_select %p36, 0, %s35
    %s38 = ssub.s32 %s18, %s37
    %s39 = ssub.s32 %s19, %s33
    %s40 = sor.u32 %s38, %s39
    %p41 = scmp.eq.s32.totalorder %s40, 0
    %s43 = sadd.s32 %s42, 1
    %s44 = scalar_select %p41, %s42, %s43
    %p47 = pneg %p41
    %p48 = scmp.eq.s32.totalorder %s11, 1
    %p49 = por %p47, %p48
    %p50 = scmp.ne.s32.totalorder %s42, %s45
    %p51 = scmp.eq.s32.totalorder %s11, 0
    %p52 = por %p50, %p51
    %p53 = scmp.ne.s32.totalorder %s42, %s45
    %p54 = scmp.eq.s32.totalorder %s16, 1
    %p55 = por %p53, %p54
    %p56 = scmp.ne.s32.totalorder %s45, %s46
    %p57 = scmp.eq.s32.totalorder %s16, 0
    %p58 = por %p56, %p57
    %p59 = scmp.ne.s32.totalorder %s45, %s46
    %p60 = scmp.eq.s32.totalorder %s17, 1
    %p61 = por %p59, %p60
    %p63 = scmp.ne.s32.totalorder %s46, %s62
    %p64 = scmp.eq.s32.totalorder %s17, 0
    %p65 = por %p63, %p64
    %s66 = ssub.s32 %s18, %s37
    %s67 = ssub.s32 %s20, %s29
    %s68 = sor.u32 %s66, %s67
    %p69 = scmp.eq.s32.totalorder %s68, 0
    %s71 = sadd.s32 %s70, 1
    %s72 = scalar_select %p69, %s70, %s71
    %p75 = pneg %p69
    %p76 = scmp.eq.s32.totalorder %s11, 1
    %p77 = por %p75, %p76
    %p78 = scmp.ne.s32.totalorder %s70, %s73
    %p79 = scmp.eq.s32.totalorder %s11, 0
    %p80 = por %p78, %p79
    %p81 = scmp.ne.s32.totalorder %s70, %s73
    %p82 = scmp.eq.s32.totalorder %s16, 1
    %p83 = por %p81, %p82
    %p84 = scmp.ne.s32.totalorder %s73, %s74
    %p85 = scmp.eq.s32.totalorder %s16, 0
    %p86 = por %p84, %p85
    %p87 = scmp.ne.s32.totalorder %s73, %s74
    %p88 = scmp.eq.s32.totalorder %s17, 1
    %p89 = por %p87, %p88
    %p91 = scmp.ne.s32.totalorder %s74, %s90
    %p92 = scmp.eq.s32.totalorder %s17, 0
    %p93 = por %p91, %p92
    %s94 = ssub.s32 %s18, %s37
    %s95 = ssub.s32 %s20, %s29
    %s96 = sor.u32 %s94, %s95
    %p97 = scmp.eq.s32.totalorder %s96, 0
    %s99 = sadd.s32 %s98, 1
    %s100 = scalar_select %p97, %s98, %s99
    %p103 = pneg %p97
    %p104 = scmp.eq.s32.totalorder %s11, 1
    %p105 = por %p103, %p104
    %p106 = scmp.ne.s32.totalorder %s98, %s101
    %p107 = scmp.eq.s32.totalorder %s11, 0
    %p108 = por %p106, %p107
    %p109 = scmp.ne.s32.totalorder %s98, %s101
    %p110 = scmp.eq.s32.totalorder %s16, 1
    %p111 = por %p109, %p110
    %p112 = scmp.ne.s32.totalorder %s101, %s102
    %p113 = scmp.eq.s32.totalorder %s16, 0
    %p114 = por %p112, %p113
    %p115 = scmp.ne.s32.totalorder %s101, %s102
    %p116 = scmp.eq.s32.totalorder %s17, 1
    %p117 = por %p115, %p116
    %p119 = scmp.ne.s32.totalorder %s102, %s118
    %p120 = scmp.eq.s32.totalorder %s17, 0
    %p121 = por %p119, %p120
    %s122 = ssub.s32 %s18, %s37
    %s123 = ssub.s32 %s20, %s29
    %s124 = sor.u32 %s122, %s123
    %p125 = scmp.eq.s32.totalorder %s124, 0
    %s127 = sadd.s32 %s126, 1
    %s128 = scalar_select %p125, %s126, %s127
    %p131 = pneg %p125
    %p132 = scmp.eq.s32.totalorder %s11, 1
    %p133 = por %p131, %p132
    %p134 = scmp.ne.s32.totalorder %s126, %s129
    %p135 = scmp.eq.s32.totalorder %s11, 0
    %p136 = por %p134, %p135
    %p137 = scmp.ne.s32.totalorder %s126, %s129
    %p138 = scmp.eq.s32.totalorder %s16, 1
    %p139 = por %p137, %p138
    %p140 = scmp.ne.s32.totalorder %s129, %s130
    %p141 = scmp.eq.s32.totalorder %s16, 0
    %p142 = por %p140, %p141
    %p143 = scmp.ne.s32.totalorder %s129, %s130
    %p144 = scmp.eq.s32.totalorder %s17, 1
    %p145 = por %p143, %p144
    %p147 = scmp.ne.s32.totalorder %s130, %s146
    %p148 = scmp.eq.s32.totalorder %s17, 0
    %p149 = por %p147, %p148
    %s150 = ssub.s32 %s18, %s37
    %s151 = ssub.s32 %s20, %s29
    %s152 = sor.u32 %s150, %s151
    %p153 = scmp.eq.s32.totalorder %s152, 0
    %s155 = sadd.s32 %s154, 1
    %s156 = scalar_select %p153, %s154, %s155
    %p159 = pneg %p153
    %p160 = scmp.eq.s32.totalorder %s11, 1
    %p161 = por %p159, %p160
    %p162 = scmp.ne.s32.totalorder %s154, %s157
    %p163 = scmp.eq.s32.totalorder %s11, 0
    %p164 = por %p162, %p163
    %p165 = scmp.ne.s32.totalorder %s154, %s157
    %p166 = scmp.eq.s32.totalorder %s16, 1
    %p167 = por %p165, %p166
    %p168 = scmp.ne.s32.totalorder %s157, %s158
    %p169 = scmp.eq.s32.totalorder %s16, 0
    %p170 = por %p168, %p169
    %p171 = scmp.ne.s32.totalorder %s157, %s158
    %p172 = scmp.eq.s32.totalorder %s17, 1
    %p173 = por %p171, %p172
    %p175 = scmp.ne.s32.totalorder %s158, %s174
    %p176 = scmp.eq.s32.totalorder %s17, 0
    %p177 = por %p175, %p176
    %s178 = ssub.s32 %s18, %s37
    %s179 = ssub.s32 %s19, %s33
    %s180 = sor.u32 %s178, %s179
    %p181 = scmp.eq.s32.totalorder %s180, 0
    %s183 = sadd.s32 %s182, 1
    %s184 = scalar_select %p181, %s182, %s183
    %p187 = pneg %p181
    %p188 = scmp.eq.s32.totalorder %s11, 1
    %p189 = por %p187, %p188
    %p190 = scmp.ne.s32.totalorder %s182, %s185
    %p191 = scmp.eq.s32.totalorder %s11, 0
    %p192 = por %p190, %p191
    %p193 = scmp.ne.s32.totalorder %s182, %s185
    %p194 = scmp.eq.s32.totalorder %s16, 1
    %p195 = por %p193, %p194
    %p196 = scmp.ne.s32.totalorder %s185, %s186
    %p197 = scmp.eq.s32.totalorder %s16, 0
    %p198 = por %p196, %p197
    %p199 = scmp.ne.s32.totalorder %s185, %s186
    %p200 = scmp.eq.s32.totalorder %s17, 1
    %p201 = por %p199, %p200
    %p203 = scmp.ne.s32.totalorder %s186, %s202
    %p204 = scmp.eq.s32.totalorder %s17, 0
    %p205 = por %p203, %p204
    %p206 = scmp.le.s32.totalorder 1, %s11
    %p207 = scmp.lt.s32.totalorder %s11, 3
    %p208 = pnand %p206, %p207
    %p209 = pneg %p208
    // Predicated region
    $region9: #{psgm_forward.8} parent=5 // pred_check
      _
    $region10: #{psgm_forward.8} parent=5 // pred_check_branch
      %211 = sbr.rel (%p208) target = $region12
    $region11: #{psgm_forward.8} parent=5 // pred_region
      %s212 = ssub.s32 %s11, 1
    $region12: #{psgm_forward.8} parent=5 // pred_fallthru
      _
    %p213 = scmp.lt.s32.totalorder %s11, 2
    // Predicated region
    $region13: #{psgm_forward.8} parent=5 // pred_check
      %p214 = pneg %p213
    $region14: #{psgm_forward.8} parent=5 // pred_check_branch
      %216 = sbr.rel (%p214) target = $region16
    $region15: #{psgm_forward.8} parent=5 // pred_region
      // Predicated region
      $region17: #{psgm_forward.8} parent=15 // pred_check
        %p217 = pneg %p52
      $region18: #{psgm_forward.8} parent=15 // pred_check_branch
        %219 = sbr.rel (%p217) target = $region20
      $region19: #{psgm_forward.8} parent=15 // pred_region
        %s220 = smul.u32 16, %s19
        %p221 = scmp.lt.s32.totalorder %s18, 1
        %s222 = scalar_select %p221, %s18, 1
        %p223 = scmp.lt.s32.totalorder %s220, 15
        %s224 = scalar_select %p223, %s220, 15
        %s225 = smul.addr %s222, 16
        %s226 = sadd.s32 %s224, %s225
        %s227 = smul.addr %s226, 4
        %s228 = scalar_lea.vmem %s0, %s227
        %s229 = smul.u32 16, %s19
      $region20: #{psgm_forward.8} parent=15 // pred_fallthru
        _
      // Predicated region
      $region21: #{psgm_forward.8} parent=15 // pred_check
        %p230 = pneg %p80
      $region22: #{psgm_forward.8} parent=15 // pred_check_branch
        %232 = sbr.rel (%p230) target = $region24
      $region23: #{psgm_forward.8} parent=15 // pred_region
        %p233 = scmp.lt.s32.totalorder %s18, 1
        %s234 = scalar_select %p233, %s18, 1
        %p235 = scmp.lt.s32.totalorder %s20, 0
        %s236 = scalar_select %p235, %s20, 0
        %s237 = sadd.s32 %s236, %s234
        %s238 = scalar_lea.vmem %s1, %s237
      $region24: #{psgm_forward.8} parent=15 // pred_fallthru
        _
      // Predicated region
      $region25: #{psgm_forward.8} parent=15 // pred_check
        %p239 = pneg %p108
      $region26: #{psgm_forward.8} parent=15 // pred_check_branch
        %241 = sbr.rel (%p239) target = $region28
      $region27: #{psgm_forward.8} parent=15 // pred_region
        %s242 = smul.u32 4, %s20
        %p243 = scmp.lt.s32.totalorder %s18, 1
        %s244 = scalar_select %p243, %s18, 1
        %p245 = scmp.lt.s32.totalorder %s242, 3
        %s246 = scalar_select %p245, %s242, 3
        %s247 = smul.addr %s244, 4
        %s248 = sadd.s32 %s246, %s247
        %s249 = smul.addr %s248, 4
        %s250 = scalar_lea.vmem %s2, %s249
        %s251 = smul.u32 4, %s20
      $region28: #{psgm_forward.8} parent=15 // pred_fallthru
        _
      // Predicated region
      $region29: #{psgm_forward.8} parent=15 // pred_check
        %p252 = pneg %p136
      $region30: #{psgm_forward.8} parent=15 // pred_check_branch
        %254 = sbr.rel (%p252) target = $region32
      $region31: #{psgm_forward.8} parent=15 // pred_region
        %p255 = scmp.lt.s32.totalorder %s18, 1
        %s256 = scalar_select %p255, %s18, 1
        %p257 = scmp.lt.s32.totalorder %s20, 0
        %s258 = scalar_select %p257, %s20, 0
        %s259 = sadd.s32 %s258, %s256
        %s260 = scalar_lea.vmem %s3, %s259
      $region32: #{psgm_forward.8} parent=15 // pred_fallthru
        _
      // Predicated region
      $region33: #{psgm_forward.8} parent=15 // pred_check
        %p261 = pneg %p164
      $region34: #{psgm_forward.8} parent=15 // pred_check_branch
        %263 = sbr.rel (%p261) target = $region36
      $region35: #{psgm_forward.8} parent=15 // pred_region
        %p264 = scmp.lt.s32.totalorder %s18, 1
        %s265 = scalar_select %p264, %s18, 1
        %p266 = scmp.lt.s32.totalorder %s20, 0
        %s267 = scalar_select %p266, %s20, 0
        %s268 = sadd.s32 %s267, %s265
        %s269 = scalar_lea.vmem %s4, %s268
      $region36: #{psgm_forward.8} parent=15 // pred_fallthru
        _
    $region16: #{psgm_forward.8} parent=5 // pred_fallthru
      _
    %p270 = scmp.le.s32.totalorder 1, %s11
    %p271 = scmp.lt.s32.totalorder %s11, 3
    %p272 = pnand %p270, %p271
    %p273 = pneg %p272
    // Predicated region
    $region37: #{psgm_forward.8} parent=5 // pred_check
      _
    $region38: #{psgm_forward.8} parent=5 // pred_check_branch
      %275 = sbr.rel (%p272) target = $region40
    $region39: #{psgm_forward.8} parent=5 // pred_region
      %s276 = ssub.s32 %s11, 1
      %s277 = smul.u32 16, %s22
      %p278 = scmp.lt.s32.totalorder %s21, 1
      %s279 = scalar_select %p278, %s21, 1
      %p280 = scmp.lt.s32.totalorder %s277, 15
      %s281 = scalar_select %p280, %s277, 15
      %s282 = smul.addr %s279, 16
      %s283 = sadd.s32 %s281, %s282
      %s284 = smul.addr %s283, 4
      %s285 = scalar_lea.vmem %s0, %s284
      %p286 = pneg %p58
      %p287 = pneg %p55
      %p288 = scmp.lt.s32.totalorder %s21, 1
      %s289 = scalar_select %p288, %s21, 1
      %p290 = scmp.lt.s32.totalorder %s23, 0
      %s291 = scalar_select %p290, %s23, 0
      %s292 = sadd.s32 %s291, %s289
      %s293 = scalar_lea.vmem %s1, %s292
      %p294 = pneg %p86
      %p295 = pneg %p83
      %s296 = smul.u32 4, %s23
      %p297 = scmp.lt.s32.totalorder %s21, 1
      %s298 = scalar_select %p297, %s21, 1
      %p299 = scmp.lt.s32.totalorder %s296, 3
      %s300 = scalar_select %p299, %s296, 3
      %s301 = smul.addr %s298, 4
      %s302 = sadd.s32 %s300, %s301
      %s303 = smul.addr %s302, 4
      %s304 = scalar_lea.vmem %s2, %s303
      %p305 = pneg %p114
      %p306 = pneg %p111
      %p307 = scmp.lt.s32.totalorder %s21, 1
      %s308 = scalar_select %p307, %s21, 1
      %p309 = scmp.lt.s32.totalorder %s23, 0
      %s310 = scalar_select %p309, %s23, 0
      %s311 = sadd.s32 %s310, %s308
      %s312 = scalar_lea.vmem %s3, %s311
      %p313 = pneg %p142
      %p314 = pneg %p139
      %p315 = scmp.lt.s32.totalorder %s21, 1
      %s316 = scalar_select %p315, %s21, 1
      %p317 = scmp.lt.s32.totalorder %s23, 0
      %s318 = scalar_select %p317, %s23, 0
      %s319 = sadd.s32 %s318, %s316
      %s320 = scalar_lea.vmem %s4, %s319
      %p321 = pneg %p170
      %p322 = pneg %p167
      %p323 = pneg %p198
      %p324 = pneg %p195
      %s325 = smul.u32 16, %s22
      %p326 = scmp.lt.s32.totalorder %s21, 1
      %s327 = scalar_select %p326, %s21, 1
      %p328 = scmp.lt.s32.totalorder %s325, 15
      %s329 = scalar_select %p328, %s325, 15
      %s330 = smul.addr %s327, 16
      %s331 = sadd.s32 %s329, %s330
      %s332 = smul.addr %s331, 4
      %s333 = scalar_lea.vmem %s5, %s332
      %s334 = smul.u32 16, %s22
      %p335 = scmp.lt.s32.totalorder %s21, 1
      %s336 = scalar_select %p335, %s21, 1
      %p337 = scmp.lt.s32.totalorder %s334, 15
      %s338 = scalar_select %p337, %s334, 15
      %s339 = smul.addr %s336, 16
      %s340 = sadd.s32 %s338, %s339
      %s341 = smul.addr %s340, 4
      %s342 = scalar_lea.vmem %s0, %s341
      %s343 = smul.u32 16, %s22
      %p344 = scmp.lt.s32.totalorder %s21, 1
      %s345 = scalar_select %p344, %s21, 1
      %p346 = scmp.lt.s32.totalorder %s23, 0
      %s347 = scalar_select %p346, %s23, 0
      %s348 = sadd.s32 %s347, %s345
      %s349 = scalar_lea.vmem %s1, %s348
      %s350 = smul.u32 4, %s23
      %p351 = scmp.lt.s32.totalorder %s21, 1
      %s352 = scalar_select %p351, %s21, 1
      %p353 = scmp.lt.s32.totalorder %s350, 3
      %s354 = scalar_select %p353, %s350, 3
      %s355 = smul.addr %s352, 4
      %s356 = sadd.s32 %s354, %s355
      %s357 = smul.addr %s356, 4
      %s358 = scalar_lea.vmem %s2, %s357
      %s359 = smul.u32 4, %s23
      %p360 = scmp.lt.s32.totalorder %s21, 1
      %s361 = scalar_select %p360, %s21, 1
      %p362 = scmp.lt.s32.totalorder %s23, 0
      %s363 = scalar_select %p362, %s23, 0
      %s364 = sadd.s32 %s363, %s361
      %s365 = scalar_lea.vmem %s3, %s364
      %p366 = scmp.lt.s32.totalorder %s21, 1
      %s367 = scalar_select %p366, %s21, 1
      %p368 = scmp.lt.s32.totalorder %s23, 0
      %s369 = scalar_select %p368, %s23, 0
      %s370 = sadd.s32 %s369, %s367
      %s371 = scalar_lea.vmem %s4, %s370
      %s372 = smul.u32 16, %s22
      %p373 = scmp.lt.s32.totalorder %s21, 1
      %s374 = scalar_select %p373, %s21, 1
      %p375 = scmp.lt.s32.totalorder %s372, 15
      %s376 = scalar_select %p375, %s372, 15
      %s377 = smul.addr %s374, 16
      %s378 = sadd.s32 %s376, %s377
      %s379 = smul.addr %s378, 4
      %s380 = scalar_lea.vmem %s5, %s379
      %s381 = smul.u32 16, %s22
      %p383 = scmp.eq.s32.totalorder %s23, 0
      // Predicated region
      $region41: #{psgm_forward.8} parent=39 // pred_check
        %p384 = pneg %p383
      $region42: #{psgm_forward.8} parent=39 // pred_check_branch
        %386 = sbr.rel (%p384) target = $region44
      $region43: #{psgm_forward.8} parent=39 // pred_region
        %vm387 = vcmask 15360
        %388 = vst.msk [vmem:[#allocation2] sm:$0xff] %vm387, 0.0
        %389 = vst.msk [vmem:[#allocation2 + $0x8] sm:$0xff] %vm387, 0.0
        %390 = vst.msk [vmem:[#allocation2 + $0x10] sm:$0xff] %vm387, 0.0
        %391 = vst.msk [vmem:[#allocation2 + $0x18] sm:$0xff] %vm387, 0.0
        %392 = vst.msk [vmem:[#allocation2 + $0x20] sm:$0xff] %vm387, 0.0
        %393 = vst.msk [vmem:[#allocation2 + $0x28] sm:$0xff] %vm387, 0.0
        %394 = vst.msk [vmem:[#allocation2 + $0x30] sm:$0xff] %vm387, 0.0
        %395 = vst.msk [vmem:[#allocation2 + $0x38] sm:$0xff] %vm387, 0.0
        %396 = vst.msk [vmem:[#allocation2 + $0x40] sm:$0xff] %vm387, 0.0
        %397 = vst.msk [vmem:[#allocation2 + $0x48] sm:$0xff] %vm387, 0.0
        %398 = vst.msk [vmem:[#allocation2 + $0x50] sm:$0xff] %vm387, 0.0
        %399 = vst.msk [vmem:[#allocation2 + $0x58] sm:$0xff] %vm387, 0.0
        %400 = vst.msk [vmem:[#allocation2 + $0x60] sm:$0xff] %vm387, 0.0
        %401 = vst.msk [vmem:[#allocation2 + $0x68] sm:$0xff] %vm387, 0.0
        %402 = vst.msk [vmem:[#allocation2 + $0x70] sm:$0xff] %vm387, 0.0
        %403 = vst.msk [vmem:[#allocation2 + $0x78] sm:$0xff] %vm387, 0.0
      $region44: #{psgm_forward.8} parent=39 // pred_fallthru
        _
      %v404 = vld [vmem:[%s342] sm:$0xf]
      %v405 = vld [vmem:[%s342 + $0x4] sm:$0xf]
      %v406 = vld [vmem:[%s342 + $0x8] sm:$0xf]
      %v407 = vld [vmem:[%s342 + $0xc] sm:$0xf]
      %v408 = vld [vmem:[%s342 + $0x10] sm:$0xf]
      %v409 = vld [vmem:[%s342 + $0x14] sm:$0xf]
      %v410 = vld [vmem:[%s342 + $0x18] sm:$0xf]
      %v411 = vld [vmem:[%s342 + $0x1c] sm:$0xf]
      %v412 = vld [vmem:[%s342 + $0x20] sm:$0xf]
      %v413 = vld [vmem:[%s342 + $0x24] sm:$0xf]
      %v414 = vld [vmem:[%s342 + $0x28] sm:$0xf]
      %v415 = vld [vmem:[%s342 + $0x2c] sm:$0xf]
      %v416 = vld [vmem:[%s342 + $0x30] sm:$0xf]
      %v417 = vld [vmem:[%s342 + $0x34] sm:$0xf]
      %v418 = vld [vmem:[%s342 + $0x38] sm:$0xf]
      %v419 = vld [vmem:[%s342 + $0x3c] sm:$0xf]
      %v420 = vld [vmem:[%s349] sm:$0x1]
      %v437 = vunpack.c.l.b16 %v404
      %v438 = vunpack.c.l.b16 %v405
      %v439 = vunpack.c.l.b16 %v406
      %v440 = vunpack.c.l.b16 %v407
      %v441 = vunpack.c.l.b16 %v408
      %v442 = vunpack.c.l.b16 %v409
      %v443 = vunpack.c.l.b16 %v410
      %v444 = vunpack.c.l.b16 %v411
      %v445 = vunpack.c.l.b16 %v412
      %v446 = vunpack.c.l.b16 %v413
      %v447 = vunpack.c.l.b16 %v414
      %v448 = vunpack.c.l.b16 %v415
      %v449 = vunpack.c.l.b16 %v416
      %v450 = vunpack.c.l.b16 %v417
      %v451 = vunpack.c.l.b16 %v418
      %v452 = vunpack.c.l.b16 %v419
      %v453 = vpack.c.b16 %v438, %v437
      %v454 = vpack.c.b16 %v440, %v439
      %v455 = vpack.c.b16 %v442, %v441
      %v456 = vpack.c.b16 %v444, %v443
      %v457 = vpack.c.b16 %v446, %v445
      %v458 = vpack.c.b16 %v448, %v447
      %v459 = vpack.c.b16 %v450, %v449
      %v460 = vpack.c.b16 %v452, %v451
      %vm461 = vcmask 15360
      %v463 = vsel %vm461, %v453, 0
      %v466 = vsel %vm461, %v454, 0
      %v469 = vsel %vm461, %v455, 0
      %v472 = vsel %vm461, %v456, 0
      %v475 = vsel %vm461, %v457, 0
      %v478 = vsel %vm461, %v458, 0
      %v481 = vsel %vm461, %v459, 0
      %v484 = vsel %vm461, %v460, 0
      %vm486 = vcmask 1040384
      %v488 = vsel %vm486, %v420, 0
      %490 = vmatpush.bf16.msra.mxu0 0
      %491 = vmatpush.bf16.msra.mxu0 0
      %492 = vmatpush.bf16.msra.mxu0 0
      %493 = vmatpush.bf16.msra.mxu0 0
      %494 = vmatpush.bf16.msra.mxu0 0
      %495 = vmatpush.bf16.msra.mxu0 0
      %496 = vmatpush.bf16.msra.mxu0 0
      %497 = vmatpush.bf16.msra.mxu0 %v488
      %498 = vmatmul.bf16.gmra.mxu0 %v463
      %v499 = vpop.f32.mrf.mxu0
      %v500 = vadd.f32 0.0, %v499
      %v501 = vpop.f32.mrf.mxu0
      %v502 = vadd.f32 0.0, %v501
      %503 = vmatmul.bf16.gmra.mxu0 %v466
      %v504 = vpop.f32.mrf.mxu0
      %v505 = vadd.f32 0.0, %v504
      %v506 = vpop.f32.mrf.mxu0
      %v507 = vadd.f32 0.0, %v506
      %508 = vmatmul.bf16.gmra.mxu0 %v469
      %v509 = vpop.f32.mrf.mxu0
      %v510 = vadd.f32 0.0, %v509
      %v511 = vpop.f32.mrf.mxu0
      %v512 = vadd.f32 0.0, %v511
      %513 = vmatmul.bf16.gmra.mxu0 %v472
      %v514 = vpop.f32.mrf.mxu0
      %v515 = vadd.f32 0.0, %v514
      %v516 = vpop.f32.mrf.mxu0
      %v517 = vadd.f32 0.0, %v516
      %518 = vmatmul.bf16.gmra.mxu0 %v475
      %v519 = vpop.f32.mrf.mxu0
      %v520 = vadd.f32 0.0, %v519
      %v521 = vpop.f32.mrf.mxu0
      %v522 = vadd.f32 0.0, %v521
      %523 = vmatmul.bf16.gmra.mxu0 %v478
      %v524 = vpop.f32.mrf.mxu0
      %v525 = vadd.f32 0.0, %v524
      %v526 = vpop.f32.mrf.mxu0
      %v527 = vadd.f32 0.0, %v526
      %528 = vmatmul.bf16.gmra.mxu0 %v481
      %v529 = vpop.f32.mrf.mxu0
      %v530 = vadd.f32 0.0, %v529
      %v531 = vpop.f32.mrf.mxu0
      %v532 = vadd.f32 0.0, %v531
      %533 = vmatmul.bf16.gmra.mxu0 %v484
      %v534 = vpop.f32.mrf.mxu0
      %v535 = vadd.f32 0.0, %v534
      %v536 = vpop.f32.mrf.mxu0
      %v537 = vadd.f32 0.0, %v536
      %538 = vdwg.mxu0
      %v539 = vld [vmem:[%s365] sm:$0x1]
      %v541 = vperm.slane %v539, 0
      %v543 = vsub.f32 %v500, %v541
      %v544 = vsub.f32 %v502, %v541
      %v545 = vsub.f32 %v505, %v541
      %v546 = vsub.f32 %v507, %v541
      %v547 = vsub.f32 %v510, %v541
      %v548 = vsub.f32 %v512, %v541
      %v549 = vsub.f32 %v515, %v541
      %v550 = vsub.f32 %v517, %v541
      %v551 = vsub.f32 %v520, %v541
      %v552 = vsub.f32 %v522, %v541
      %v553 = vsub.f32 %v525, %v541
      %v554 = vsub.f32 %v527, %v541
      %v555 = vsub.f32 %v530, %v541
      %v556 = vsub.f32 %v532, %v541
      %v557 = vsub.f32 %v535, %v541
      %v558 = vsub.f32 %v537, %v541
      %v559 = vmul.f32 %v543, 1.442695
      %v560 = vpow.pop %v559
      %v561 = vmul.f32 %v544, 1.442695
      %v562 = vpow.pop %v561
      %v563 = vmul.f32 %v545, 1.442695
      %v564 = vpow.pop %v563
      %v565 = vmul.f32 %v546, 1.442695
      %v566 = vpow.pop %v565
      %v567 = vmul.f32 %v547, 1.442695
      %v568 = vpow.pop %v567
      %v569 = vmul.f32 %v548, 1.442695
      %v570 = vpow.pop %v569
      %v571 = vmul.f32 %v549, 1.442695
      %v572 = vpow.pop %v571
      %v573 = vmul.f32 %v550, 1.442695
      %v574 = vpow.pop %v573
      %v575 = vmul.f32 %v551, 1.442695
      %v576 = vpow.pop %v575
      %v577 = vmul.f32 %v552, 1.442695
      %v578 = vpow.pop %v577
      %v579 = vmul.f32 %v553, 1.442695
      %v580 = vpow.pop %v579
      %v581 = vmul.f32 %v554, 1.442695
      %v582 = vpow.pop %v581
      %v583 = vmul.f32 %v555, 1.442695
      %v584 = vpow.pop %v583
      %v585 = vmul.f32 %v556, 1.442695
      %v586 = vpow.pop %v585
      %v587 = vmul.f32 %v557, 1.442695
      %v588 = vpow.pop %v587
      %v589 = vmul.f32 %v558, 1.442695
      %v590 = vpow.pop %v589
      %v591 = vld [vmem:[%s371] sm:$0x1]
      %v593 = vperm.slane %v591, 0
      %v595 = vmul.f32 %v560, %v593
      %v596 = vmul.f32 %v562, %v593
      %v597 = vmul.f32 %v564, %v593
      %v598 = vmul.f32 %v566, %v593
      %v599 = vmul.f32 %v568, %v593
      %v600 = vmul.f32 %v570, %v593
      %v601 = vmul.f32 %v572, %v593
      %v602 = vmul.f32 %v574, %v593
      %v603 = vmul.f32 %v576, %v593
      %v604 = vmul.f32 %v578, %v593
      %v605 = vmul.f32 %v580, %v593
      %v606 = vmul.f32 %v582, %v593
      %v607 = vmul.f32 %v584, %v593
      %v608 = vmul.f32 %v586, %v593
      %v609 = vmul.f32 %v588, %v593
      %v610 = vmul.f32 %v590, %v593
      %v611 = vld [vmem:[#allocation2] sm:$0xff]
      %v612 = vld [vmem:[#allocation2 + $0x8] sm:$0xff]
      %v613 = vld [vmem:[#allocation2 + $0x10] sm:$0xff]
      %v614 = vld [vmem:[#allocation2 + $0x18] sm:$0xff]
      %v615 = vld [vmem:[#allocation2 + $0x20] sm:$0xff]
      %v616 = vld [vmem:[#allocation2 + $0x28] sm:$0xff]
      %v617 = vld [vmem:[#allocation2 + $0x30] sm:$0xff]
      %v618 = vld [vmem:[#allocation2 + $0x38] sm:$0xff]
      %v619 = vld [vmem:[#allocation2 + $0x40] sm:$0xff]
      %v620 = vld [vmem:[#allocation2 + $0x48] sm:$0xff]
      %v621 = vld [vmem:[#allocation2 + $0x50] sm:$0xff]
      %v622 = vld [vmem:[#allocation2 + $0x58] sm:$0xff]
      %v623 = vld [vmem:[#allocation2 + $0x60] sm:$0xff]
      %v624 = vld [vmem:[#allocation2 + $0x68] sm:$0xff]
      %v625 = vld [vmem:[#allocation2 + $0x70] sm:$0xff]
      %v626 = vld [vmem:[#allocation2 + $0x78] sm:$0xff]
      %v627 = vpack.c.bf16 %v596, %v595
      %v628 = vpack.c.bf16 %v598, %v597
      %v629 = vpack.c.bf16 %v600, %v599
      %v630 = vpack.c.bf16 %v602, %v601
      %v631 = vpack.c.bf16 %v604, %v603
      %v632 = vpack.c.bf16 %v606, %v605
      %v633 = vpack.c.bf16 %v608, %v607
      %v634 = vpack.c.bf16 %v610, %v609
      %v635 = vld [vmem:[%s358] sm:$0xf]
      %v636 = vld [vmem:[%s358 + $0x4] sm:$0xf]
      %v637 = vld [vmem:[%s358 + $0x8] sm:$0xf]
      %v638 = vld [vmem:[%s358 + $0xc] sm:$0xf]
      %v643 = vunpack.c.l.b16 %v635
      %v644 = vunpack.c.l.b16 %v636
      %v645 = vunpack.c.l.b16 %v637
      %v646 = vunpack.c.l.b16 %v638
      %v647 = vpack.c.b16 %v644, %v643
      %v648 = vpack.c.b16 %v646, %v645
      %vm651 = vcmask 261120
      %v653 = vsel %vm651, %v627, 0
      %v656 = vsel %vm651, %v628, 0
      %v659 = vsel %vm651, %v629, 0
      %v662 = vsel %vm651, %v630, 0
      %v665 = vsel %vm651, %v631, 0
      %v668 = vsel %vm651, %v632, 0
      %v671 = vsel %vm651, %v633, 0
      %v674 = vsel %vm651, %v634, 0
      %676 = vmatpush.bf16.msra.mxu0 0
      %677 = vmatpush.bf16.msra.mxu0 0
      %678 = vmatpush.bf16.msra.mxu0 0
      %679 = vmatpush.bf16.msra.mxu0 0
      %680 = vmatpush.bf16.msra.mxu0 0
      %681 = vmatpush.bf16.msra.mxu0 0
      %682 = vmatpush.bf16.msra.mxu0 %v648
      %683 = vmatpush.bf16.msra.mxu0 %v647
      %684 = vmatmul.bf16.gmra.mxu0 %v653
      %v685 = vpop.f32.mrf.mxu0
      %v686 = vadd.f32 0.0, %v685
      %v687 = vpop.f32.mrf.mxu0
      %v688 = vadd.f32 0.0, %v687
      %689 = vmatmul.bf16.gmra.mxu0 %v656
      %v690 = vpop.f32.mrf.mxu0
      %v691 = vadd.f32 0.0, %v690
      %v692 = vpop.f32.mrf.mxu0
      %v693 = vadd.f32 0.0, %v692
      %694 = vmatmul.bf16.gmra.mxu0 %v659
      %v695 = vpop.f32.mrf.mxu0
      %v696 = vadd.f32 0.0, %v695
      %v697 = vpop.f32.mrf.mxu0
      %v698 = vadd.f32 0.0, %v697
      %699 = vmatmul.bf16.gmra.mxu0 %v662
      %v700 = vpop.f32.mrf.mxu0
      %v701 = vadd.f32 0.0, %v700
      %v702 = vpop.f32.mrf.mxu0
      %v703 = vadd.f32 0.0, %v702
      %704 = vmatmul.bf16.gmra.mxu0 %v665
      %v705 = vpop.f32.mrf.mxu0
      %v706 = vadd.f32 0.0, %v705
      %v707 = vpop.f32.mrf.mxu0
      %v708 = vadd.f32 0.0, %v707
      %709 = vmatmul.bf16.gmra.mxu0 %v668
      %v710 = vpop.f32.mrf.mxu0
      %v711 = vadd.f32 0.0, %v710
      %v712 = vpop.f32.mrf.mxu0
      %v713 = vadd.f32 0.0, %v712
      %714 = vmatmul.bf16.gmra.mxu0 %v671
      %v715 = vpop.f32.mrf.mxu0
      %v716 = vadd.f32 0.0, %v715
      %v717 = vpop.f32.mrf.mxu0
      %v718 = vadd.f32 0.0, %v717
      %719 = vmatmul.bf16.gmra.mxu0 %v674
      %v720 = vpop.f32.mrf.mxu0
      %v721 = vadd.f32 0.0, %v720
      %v722 = vpop.f32.mrf.mxu0
      %v723 = vadd.f32 0.0, %v722
      %724 = vdwg.mxu0
      %v725 = vadd.f32 %v611, %v686
      %v726 = vadd.f32 %v612, %v688
      %v727 = vadd.f32 %v613, %v691
      %v728 = vadd.f32 %v614, %v693
      %v729 = vadd.f32 %v615, %v696
      %v730 = vadd.f32 %v616, %v698
      %v731 = vadd.f32 %v617, %v701
      %v732 = vadd.f32 %v618, %v703
      %v733 = vadd.f32 %v619, %v706
      %v734 = vadd.f32 %v620, %v708
      %v735 = vadd.f32 %v621, %v711
      %v736 = vadd.f32 %v622, %v713
      %v737 = vadd.f32 %v623, %v716
      %v738 = vadd.f32 %v624, %v718
      %v739 = vadd.f32 %v625, %v721
      %v740 = vadd.f32 %v626, %v723
      %741 = vst.msk [vmem:[#allocation2] sm:$0xff] %vm461, %v725
      %742 = vst.msk [vmem:[#allocation2 + $0x8] sm:$0xff] %vm461, %v726
      %743 = vst.msk [vmem:[#allocation2 + $0x10] sm:$0xff] %vm461, %v727
      %744 = vst.msk [vmem:[#allocation2 + $0x18] sm:$0xff] %vm461, %v728
      %745 = vst.msk [vmem:[#allocation2 + $0x20] sm:$0xff] %vm461, %v729
      %746 = vst.msk [vmem:[#allocation2 + $0x28] sm:$0xff] %vm461, %v730
      %747 = vst.msk [vmem:[#allocation2 + $0x30] sm:$0xff] %vm461, %v731
      %748 = vst.msk [vmem:[#allocation2 + $0x38] sm:$0xff] %vm461, %v732
      %749 = vst.msk [vmem:[#allocation2 + $0x40] sm:$0xff] %vm461, %v733
      %750 = vst.msk [vmem:[#allocation2 + $0x48] sm:$0xff] %vm461, %v734
      %751 = vst.msk [vmem:[#allocation2 + $0x50] sm:$0xff] %vm461, %v735
      %752 = vst.msk [vmem:[#allocation2 + $0x58] sm:$0xff] %vm461, %v736
      %753 = vst.msk [vmem:[#allocation2 + $0x60] sm:$0xff] %vm461, %v737
      %754 = vst.msk [vmem:[#allocation2 + $0x68] sm:$0xff] %vm461, %v738
      %755 = vst.msk [vmem:[#allocation2 + $0x70] sm:$0xff] %vm461, %v739
      %756 = vst.msk [vmem:[#allocation2 + $0x78] sm:$0xff] %vm461, %v740
      // Predicated region
      $region45: #{psgm_forward.8} parent=39 // pred_check
        %p757 = pneg %p383
      $region46: #{psgm_forward.8} parent=39 // pred_check_branch
        %759 = sbr.rel (%p757) target = $region48
      $region47: #{psgm_forward.8} parent=39 // pred_region
        %v760 = vld [vmem:[#allocation2] sm:$0xff]
        %v761 = vld [vmem:[#allocation2 + $0x8] sm:$0xff]
        %v762 = vld [vmem:[#allocation2 + $0x10] sm:$0xff]
        %v763 = vld [vmem:[#allocation2 + $0x18] sm:$0xff]
        %v764 = vld [vmem:[#allocation2 + $0x20] sm:$0xff]
        %v765 = vld [vmem:[#allocation2 + $0x28] sm:$0xff]
        %v766 = vld [vmem:[#allocation2 + $0x30] sm:$0xff]
        %v767 = vld [vmem:[#allocation2 + $0x38] sm:$0xff]
        %v768 = vld [vmem:[#allocation2 + $0x40] sm:$0xff]
        %v769 = vld [vmem:[#allocation2 + $0x48] sm:$0xff]
        %v770 = vld [vmem:[#allocation2 + $0x50] sm:$0xff]
        %v771 = vld [vmem:[#allocation2 + $0x58] sm:$0xff]
        %v772 = vld [vmem:[#allocation2 + $0x60] sm:$0xff]
        %v773 = vld [vmem:[#allocation2 + $0x68] sm:$0xff]
        %v774 = vld [vmem:[#allocation2 + $0x70] sm:$0xff]
        %v775 = vld [vmem:[#allocation2 + $0x78] sm:$0xff]
        %v776 = vpack.c.bf16 %v760, %v760
        %v777 = vpack.c.bf16 %v761, %v761
        %v778 = vpack.c.bf16 %v762, %v762
        %v779 = vpack.c.bf16 %v763, %v763
        %v780 = vpack.c.bf16 %v764, %v764
        %v781 = vpack.c.bf16 %v765, %v765
        %v782 = vpack.c.bf16 %v766, %v766
        %v783 = vpack.c.bf16 %v767, %v767
        %v784 = vpack.c.bf16 %v768, %v768
        %v785 = vpack.c.bf16 %v769, %v769
        %v786 = vpack.c.bf16 %v770, %v770
        %v787 = vpack.c.bf16 %v771, %v771
        %v788 = vpack.c.bf16 %v772, %v772
        %v789 = vpack.c.bf16 %v773, %v773
        %v790 = vpack.c.bf16 %v774, %v774
        %v791 = vpack.c.bf16 %v775, %v775
        %vm792 = vcmask 11264
        %793 = vst.msk [vmem:[%s380] sm:$0xf] %vm792, %v776
        %794 = vst.msk [vmem:[%s380 + $0x4] sm:$0xf] %vm792, %v777
        %795 = vst.msk [vmem:[%s380 + $0x8] sm:$0xf] %vm792, %v778
        %796 = vst.msk [vmem:[%s380 + $0xc] sm:$0xf] %vm792, %v779
        %797 = vst.msk [vmem:[%s380 + $0x10] sm:$0xf] %vm792, %v780
        %798 = vst.msk [vmem:[%s380 + $0x14] sm:$0xf] %vm792, %v781
        %799 = vst.msk [vmem:[%s380 + $0x18] sm:$0xf] %vm792, %v782
        %800 = vst.msk [vmem:[%s380 + $0x1c] sm:$0xf] %vm792, %v783
        %801 = vst.msk [vmem:[%s380 + $0x20] sm:$0xf] %vm792, %v784
        %802 = vst.msk [vmem:[%s380 + $0x24] sm:$0xf] %vm792, %v785
        %803 = vst.msk [vmem:[%s380 + $0x28] sm:$0xf] %vm792, %v786
        %804 = vst.msk [vmem:[%s380 + $0x2c] sm:$0xf] %vm792, %v787
        %805 = vst.msk [vmem:[%s380 + $0x30] sm:$0xf] %vm792, %v788
        %806 = vst.msk [vmem:[%s380 + $0x34] sm:$0xf] %vm792, %v789
        %807 = vst.msk [vmem:[%s380 + $0x38] sm:$0xf] %vm792, %v790
        %808 = vst.msk [vmem:[%s380 + $0x3c] sm:$0xf] %vm792, %v791
      $region48: #{psgm_forward.8} parent=39 // pred_fallthru
        _
      %s809 = smul.u32 16, %s22
      %p810 = scmp.lt.s32.totalorder %s21, 1
      %s811 = scalar_select %p810, %s21, 1
      %p812 = scmp.lt.s32.totalorder %s809, 15
      %s813 = scalar_select %p812, %s809, 15
      %s814 = smul.addr %s811, 16
      %s815 = sadd.s32 %s813, %s814
      %s816 = smul.addr %s815, 4
      %s817 = scalar_lea.vmem %s5, %s816
      // Predicated region
      $region49: #{psgm_forward.8} parent=39 // pred_check
        %p818 = pneg %p195
      $region50: #{psgm_forward.8} parent=39 // pred_check_branch
        %820 = sbr.rel (%p818) target = $region52
      $region51: #{psgm_forward.8} parent=39 // pred_region
        %s821 = smul.u32 16, %s22
      $region52: #{psgm_forward.8} parent=39 // pred_fallthru
        _
    $region40: #{psgm_forward.8} parent=5 // pred_fallthru
      _
    %p822 = scmp.le.s32.totalorder 2, %s11
    // Predicated region
    $region53: #{psgm_forward.8} parent=5 // pred_check
      %p823 = pneg %p822
    $region54: #{psgm_forward.8} parent=5 // pred_check_branch
      %825 = sbr.rel (%p823) target = $region56
    $region55: #{psgm_forward.8} parent=5 // pred_region
      %s826 = ssub.s32 %s11, 2
      // Predicated region
      $region57: #{psgm_forward.8} parent=55 // pred_check
        %p827 = pneg %p201
      $region58: #{psgm_forward.8} parent=55 // pred_check_branch
        %829 = sbr.rel (%p827) target = $region60
      $region59: #{psgm_forward.8} parent=55 // pred_region
        %s830 = smul.u32 16, %s25
        %p831 = scmp.lt.s32.totalorder %s24, 1
        %s832 = scalar_select %p831, %s24, 1
        %p833 = scmp.lt.s32.totalorder %s830, 15
        %s834 = scalar_select %p833, %s830, 15
        %s835 = smul.addr %s832, 16
        %s836 = sadd.s32 %s834, %s835
        %s837 = smul.addr %s836, 4
        %s838 = scalar_lea.vmem %s5, %s837
      $region60: #{psgm_forward.8} parent=55 // pred_fallthru
        _
    $region56: #{psgm_forward.8} parent=5 // pred_fallthru
      _
  $region6: #{psgm_forward.8} parent=0 // loop_footer
    %s15 = sadd.s32 1, %s11
  $region7: #{psgm_forward.8} parent=0 // loop_footer_branch
    %10 = sbr.rel target = $region3
  $region8: #{psgm_forward.8} parent=0 // loop_exit
    _

// kernel: psgm_forward.9
$region0: #{psgm_forward.9}
  #allocation0 [shape = 'u32[]', space=smem, size = 0x4, offset = 0x4, fixed_abs, tag = 'smem constant byte address 0x4 - core index']
  #allocation1 [shape = 'u32[72,128]{1,0:T(1,128)}', space=vmem, size = 0x9000, scoped, tag = 'internal scratch']
  %s0 = inlined_call_operand.vmem [shape: bf16[256,2], index: 0, kind: input, shape index: {}]
  %s1 = inlined_call_operand.vmem [shape: bf16[2,4], index: 1, kind: input, shape index: {}]
  %s2 = inlined_call_operand.vmem [shape: f32[1,4], index: 2, kind: input, shape index: {}]
  %s3 = inlined_call_operand.vmem [shape: f32[256,4], index: 3, kind: input, shape index: {}]
  %s4 = inlined_call_operand.vmem [shape: f32[256,4], index: 4, kind: output, shape index: {}]
  %s5 = sld [smem:[#allocation0]]
  $region26: #{psgm_forward.9} parent=0
    _
  %s7 = ssub.s32 1, %s5
  %s8 = scalar_select 0, %s7, %s5
  // Predicated region
  $region2: #{psgm_forward.9} parent=0 // pred_check
    _
  $region3: #{psgm_forward.9} parent=0 // pred_check_branch
    %10 = sbr.rel (0) target = $region5
  $region4: #{psgm_forward.9} parent=0 // pred_region
    _
  $region5: #{psgm_forward.9} parent=0 // pred_fallthru
    _
  // Predicated region
  $region6: #{psgm_forward.9} parent=0 // pred_check
    _
  $region7: #{psgm_forward.9} parent=0 // pred_check_branch
    %12 = sbr.rel (0) target = $region9
  $region8: #{psgm_forward.9} parent=0 // pred_region
    _
  $region9: #{psgm_forward.9} parent=0 // pred_fallthru
    _
  // Predicated region
  $region10: #{psgm_forward.9} parent=0 // pred_check
    _
  $region11: #{psgm_forward.9} parent=0 // pred_check_branch
    %14 = sbr.rel (0) target = $region13
  $region12: #{psgm_forward.9} parent=0 // pred_region
    _
  $region13: #{psgm_forward.9} parent=0 // pred_fallthru
    _
  // Predicated region
  $region14: #{psgm_forward.9} parent=0 // pred_check
    _
  $region15: #{psgm_forward.9} parent=0 // pred_check_branch
    %16 = sbr.rel (0) target = $region17
  $region16: #{psgm_forward.9} parent=0 // pred_region
    _
  $region17: #{psgm_forward.9} parent=0 // pred_fallthru
    _
  %v18 = vld [vmem:[%s0] sm:$0xf]
  %v19 = vld [vmem:[%s0 + $0x4] sm:$0xf]
  %v20 = vld [vmem:[%s0 + $0x8] sm:$0xf]
  %v21 = vld [vmem:[%s0 + $0xc] sm:$0xf]
  %v22 = vld [vmem:[%s0 + $0x10] sm:$0xf]
  %v23 = vld [vmem:[%s0 + $0x14] sm:$0xf]
  %v24 = vld [vmem:[%s0 + $0x18] sm:$0xf]
  %v25 = vld [vmem:[%s0 + $0x1c] sm:$0xf]
  %v26 = vld [vmem:[%s0 + $0x20] sm:$0xf]
  %v27 = vld [vmem:[%s0 + $0x24] sm:$0xf]
  %v28 = vld [vmem:[%s0 + $0x28] sm:$0xf]
  %v29 = vld [vmem:[%s0 + $0x2c] sm:$0xf]
  %v30 = vld [vmem:[%s0 + $0x30] sm:$0xf]
  %v31 = vld [vmem:[%s0 + $0x34] sm:$0xf]
  %v32 = vld [vmem:[%s0 + $0x38] sm:$0xf]
  %v33 = vld [vmem:[%s0 + $0x3c] sm:$0xf]
  %v34 = vld [vmem:[%s0 + $0x40] sm:$0xf]
  %v35 = vld [vmem:[%s0 + $0x44] sm:$0xf]
  %v36 = vld [vmem:[%s0 + $0x48] sm:$0xf]
  %v37 = vld [vmem:[%s0 + $0x4c] sm:$0xf]
  %v38 = vld [vmem:[%s0 + $0x50] sm:$0xf]
  %v39 = vld [vmem:[%s0 + $0x54] sm:$0xf]
  %v40 = vld [vmem:[%s0 + $0x58] sm:$0xf]
  %v41 = vld [vmem:[%s0 + $0x5c] sm:$0xf]
  %v42 = vld [vmem:[%s0 + $0x60] sm:$0xf]
  %v43 = vld [vmem:[%s0 + $0x64] sm:$0xf]
  %v44 = vld [vmem:[%s0 + $0x68] sm:$0xf]
  %v45 = vld [vmem:[%s0 + $0x6c] sm:$0xf]
  %v46 = vld [vmem:[%s0 + $0x70] sm:$0xf]
  %v47 = vld [vmem:[%s0 + $0x74] sm:$0xf]
  %v48 = vld [vmem:[%s0 + $0x78] sm:$0xf]
  %v49 = vld [vmem:[%s0 + $0x7c] sm:$0xf]
  %v50 = vld [vmem:[%s1] sm:$0x1]
  %v51 = vld [vmem:[%s2] sm:$0x1]
  %v53 = vperm.slane %v51, 0
  %v87 = vunpack.c.l.b16 %v18
  %v88 = vunpack.c.l.b16 %v19
  %v89 = vunpack.c.l.b16 %v20
  %v90 = vunpack.c.l.b16 %v21
  %v91 = vunpack.c.l.b16 %v22
  %v92 = vunpack.c.l.b16 %v23
  %v93 = vunpack.c.l.b16 %v24
  %v94 = vunpack.c.l.b16 %v25
  %v95 = vunpack.c.l.b16 %v26
  %v96 = vunpack.c.l.b16 %v27
  %v97 = vunpack.c.l.b16 %v28
  %v98 = vunpack.c.l.b16 %v29
  %v99 = vunpack.c.l.b16 %v30
  %v100 = vunpack.c.l.b16 %v31
  %v101 = vunpack.c.l.b16 %v32
  %v102 = vunpack.c.l.b16 %v33
  %v103 = vunpack.c.l.b16 %v34
  %v104 = vunpack.c.l.b16 %v35
  %v105 = vunpack.c.l.b16 %v36
  %v106 = vunpack.c.l.b16 %v37
  %v107 = vunpack.c.l.b16 %v38
  %v108 = vunpack.c.l.b16 %v39
  %v109 = vunpack.c.l.b16 %v40
  %v110 = vunpack.c.l.b16 %v41
  %v111 = vunpack.c.l.b16 %v42
  %v112 = vunpack.c.l.b16 %v43
  %v113 = vunpack.c.l.b16 %v44
  %v114 = vunpack.c.l.b16 %v45
  %v115 = vunpack.c.l.b16 %v46
  %v116 = vunpack.c.l.b16 %v47
  %v117 = vunpack.c.l.b16 %v48
  %v118 = vunpack.c.l.b16 %v49
  %v119 = vpack.c.b16 %v88, %v87
  %v120 = vpack.c.b16 %v90, %v89
  %v121 = vpack.c.b16 %v92, %v91
  %v122 = vpack.c.b16 %v94, %v93
  %v123 = vpack.c.b16 %v96, %v95
  %v124 = vpack.c.b16 %v98, %v97
  %v125 = vpack.c.b16 %v100, %v99
  %v126 = vpack.c.b16 %v102, %v101
  %v127 = vpack.c.b16 %v104, %v103
  %v128 = vpack.c.b16 %v106, %v105
  %v129 = vpack.c.b16 %v108, %v107
  %v130 = vpack.c.b16 %v110, %v109
  %v131 = vpack.c.b16 %v112, %v111
  %v132 = vpack.c.b16 %v114, %v113
  %v133 = vpack.c.b16 %v116, %v115
  %v134 = vpack.c.b16 %v118, %v117
  %vm135 = vcmask 15360
  %v137 = vsel %vm135, %v119, 0
  %v140 = vsel %vm135, %v120, 0
  %v143 = vsel %vm135, %v121, 0
  %v146 = vsel %vm135, %v122, 0
  %v149 = vsel %vm135, %v123, 0
  %v152 = vsel %vm135, %v124, 0
  %v155 = vsel %vm135, %v125, 0
  %v158 = vsel %vm135, %v126, 0
  %v161 = vsel %vm135, %v127, 0
  %v164 = vsel %vm135, %v128, 0
  %v167 = vsel %vm135, %v129, 0
  %v170 = vsel %vm135, %v130, 0
  %v173 = vsel %vm135, %v131, 0
  %v176 = vsel %vm135, %v132, 0
  %v179 = vsel %vm135, %v133, 0
  %v182 = vsel %vm135, %v134, 0
  %vm184 = vcmask 1040384
  %v186 = vsel %vm184, %v50, 0
  %188 = vmatpush.bf16.msra.mxu0 0
  %189 = vmatpush.bf16.msra.mxu0 0
  %190 = vmatpush.bf16.msra.mxu0 0
  %191 = vmatpush.bf16.msra.mxu0 0
  %192 = vmatpush.bf16.msra.mxu0 0
  %193 = vmatpush.bf16.msra.mxu0 0
  %194 = vmatpush.bf16.msra.mxu0 0
  %195 = vmatpush.bf16.msra.mxu0 %v186
  %196 = vmatmul.bf16.gmra.mxu0 %v137
  %v197 = vpop.f32.mrf.mxu0
  %v198 = vadd.f32 %v53, %v197
  %v199 = vpop.f32.mrf.mxu0
  %v200 = vadd.f32 %v53, %v199
  %201 = vmatmul.bf16.gmra.mxu0 %v140
  %v202 = vpop.f32.mrf.mxu0
  %v203 = vadd.f32 %v53, %v202
  %v204 = vpop.f32.mrf.mxu0
  %v205 = vadd.f32 %v53, %v204
  %206 = vmatmul.bf16.gmra.mxu0 %v143
  %v207 = vpop.f32.mrf.mxu0
  %v208 = vadd.f32 %v53, %v207
  %v209 = vpop.f32.mrf.mxu0
  %v210 = vadd.f32 %v53, %v209
  %211 = vmatmul.bf16.gmra.mxu0 %v146
  %v212 = vpop.f32.mrf.mxu0
  %v213 = vadd.f32 %v53, %v212
  %v214 = vpop.f32.mrf.mxu0
  %v215 = vadd.f32 %v53, %v214
  %216 = vmatmul.bf16.gmra.mxu0 %v149
  %v217 = vpop.f32.mrf.mxu0
  %v218 = vadd.f32 %v53, %v217
  %v219 = vpop.f32.mrf.mxu0
  %v220 = vadd.f32 %v53, %v219
  %221 = vmatmul.bf16.gmra.mxu0 %v152
  %v222 = vpop.f32.mrf.mxu0
  %v223 = vadd.f32 %v53, %v222
  %v224 = vpop.f32.mrf.mxu0
  %v225 = vadd.f32 %v53, %v224
  %226 = vmatmul.bf16.gmra.mxu0 %v155
  %v227 = vpop.f32.mrf.mxu0
  %v228 = vadd.f32 %v53, %v227
  %v229 = vpop.f32.mrf.mxu0
  %v230 = vadd.f32 %v53, %v229
  %231 = vmatmul.bf16.gmra.mxu0 %v158
  %v232 = vpop.f32.mrf.mxu0
  %v233 = vadd.f32 %v53, %v232
  %v234 = vpop.f32.mrf.mxu0
  %v235 = vadd.f32 %v53, %v234
  %236 = vmatmul.bf16.gmra.mxu0 %v161
  %v237 = vpop.f32.mrf.mxu0
  %v238 = vadd.f32 %v53, %v237
  %v239 = vpop.f32.mrf.mxu0
  %v240 = vadd.f32 %v53, %v239
  %241 = vmatmul.bf16.gmra.mxu0 %v164
  %v242 = vpop.f32.mrf.mxu0
  %v243 = vadd.f32 %v53, %v242
  %v244 = vpop.f32.mrf.mxu0
  %v245 = vadd.f32 %v53, %v244
  %246 = vmatmul.bf16.gmra.mxu0 %v167
  %v247 = vpop.f32.mrf.mxu0
  %v248 = vadd.f32 %v53, %v247
  %v249 = vpop.f32.mrf.mxu0
  %v250 = vadd.f32 %v53, %v249
  %251 = vmatmul.bf16.gmra.mxu0 %v170
  %v252 = vpop.f32.mrf.mxu0
  %v253 = vadd.f32 %v53, %v252
  %v254 = vpop.f32.mrf.mxu0
  %v255 = vadd.f32 %v53, %v254
  %256 = vmatmul.bf16.gmra.mxu0 %v173
  %v257 = vpop.f32.mrf.mxu0
  %v258 = vadd.f32 %v53, %v257
  %v259 = vpop.f32.mrf.mxu0
  %v260 = vadd.f32 %v53, %v259
  %261 = vmatmul.bf16.gmra.mxu0 %v176
  %v262 = vpop.f32.mrf.mxu0
  %v263 = vadd.f32 %v53, %v262
  %v264 = vpop.f32.mrf.mxu0
  %v265 = vadd.f32 %v53, %v264
  %266 = vmatmul.bf16.gmra.mxu0 %v179
  %v267 = vpop.f32.mrf.mxu0
  %v268 = vadd.f32 %v53, %v267
  %v269 = vpop.f32.mrf.mxu0
  %v270 = vadd.f32 %v53, %v269
  %271 = vmatmul.bf16.gmra.mxu0 %v182
  %v272 = vpop.f32.mrf.mxu0
  %v273 = vadd.f32 %v53, %v272
  %v274 = vpop.f32.mrf.mxu0
  %v275 = vadd.f32 %v53, %v274
  %276 = vdwg.mxu0
  %v277 = vld [vmem:[%s3] sm:$0xff]
  %v278 = vld [vmem:[%s3 + $0x8] sm:$0xff]
  %v279 = vld [vmem:[%s3 + $0x10] sm:$0xff]
  %v280 = vld [vmem:[%s3 + $0x18] sm:$0xff]
  %v281 = vld [vmem:[%s3 + $0x20] sm:$0xff]
  %v282 = vld [vmem:[%s3 + $0x28] sm:$0xff]
  %v283 = vld [vmem:[%s3 + $0x30] sm:$0xff]
  %v284 = vld [vmem:[%s3 + $0x38] sm:$0xff]
  %v285 = vld [vmem:[%s3 + $0x40] sm:$0xff]
  %v286 = vld [vmem:[%s3 + $0x48] sm:$0xff]
  %v287 = vld [vmem:[%s3 + $0x50] sm:$0xff]
  %v288 = vld [vmem:[%s3 + $0x58] sm:$0xff]
  %v289 = vld [vmem:[%s3 + $0x60] sm:$0xff]
  %v290 = vld [vmem:[%s3 + $0x68] sm:$0xff]
  %v291 = vld [vmem:[%s3 + $0x70] sm:$0xff]
  %v292 = vld [vmem:[%s3 + $0x78] sm:$0xff]
  %v293 = vld [vmem:[%s3 + $0x80] sm:$0xff]
  %v294 = vld [vmem:[%s3 + $0x88] sm:$0xff]
  %v295 = vld [vmem:[%s3 + $0x90] sm:$0xff]
  %v296 = vld [vmem:[%s3 + $0x98] sm:$0xff]
  %v297 = vld [vmem:[%s3 + $0xa0] sm:$0xff]
  %v298 = vld [vmem:[%s3 + $0xa8] sm:$0xff]
  %v299 = vld [vmem:[%s3 + $0xb0] sm:$0xff]
  %v300 = vld [vmem:[%s3 + $0xb8] sm:$0xff]
  %v301 = vld [vmem:[%s3 + $0xc0] sm:$0xff]
  %v302 = vld [vmem:[%s3 + $0xc8] sm:$0xff]
  %v303 = vld [vmem:[%s3 + $0xd0] sm:$0xff]
  %v304 = vld [vmem:[%s3 + $0xd8] sm:$0xff]
  %v305 = vld [vmem:[%s3 + $0xe0] sm:$0xff]
  %v306 = vld [vmem:[%s3 + $0xe8] sm:$0xff]
  %v307 = vld [vmem:[%s3 + $0xf0] sm:$0xff]
  %v308 = vld [vmem:[%s3 + $0xf8] sm:$0xff]
  %v309 = vadd.f32 %v198, %v277
  %v310 = vadd.f32 %v200, %v278
  %v311 = vadd.f32 %v203, %v279
  %v312 = vadd.f32 %v205, %v280
  %v313 = vadd.f32 %v208, %v281
  %v314 = vadd.f32 %v210, %v282
  %v315 = vadd.f32 %v213, %v283
  %v316 = vadd.f32 %v215, %v284
  %v317 = vadd.f32 %v218, %v285
  %v318 = vadd.f32 %v220, %v286
  %v319 = vadd.f32 %v223, %v287
  %v320 = vadd.f32 %v225, %v288
  %v321 = vadd.f32 %v228, %v289
  %v322 = vadd.f32 %v230, %v290
  %v323 = vadd.f32 %v233, %v291
  %v324 = vadd.f32 %v235, %v292
  %v325 = vadd.f32 %v238, %v293
  %v326 = vadd.f32 %v240, %v294
  %v327 = vadd.f32 %v243, %v295
  %v328 = vadd.f32 %v245, %v296
  %v329 = vadd.f32 %v248, %v297
  %v330 = vadd.f32 %v250, %v298
  %v331 = vadd.f32 %v253, %v299
  %v332 = vadd.f32 %v255, %v300
  %v333 = vadd.f32 %v258, %v301
  %v334 = vadd.f32 %v260, %v302
  %v335 = vadd.f32 %v263, %v303
  %v336 = vadd.f32 %v265, %v304
  %v337 = vadd.f32 %v268, %v305
  %v338 = vadd.f32 %v270, %v306
  %v339 = vadd.f32 %v273, %v307
  %v340 = vadd.f32 %v275, %v308
  %vm341 = vcmask 31744
  %342 = vst.msk [vmem:[%s4] sm:$0xff] %vm341, %v309
  %343 = vst.msk [vmem:[%s4 + $0x8] sm:$0xff] %vm341, %v310
  %344 = vst.msk [vmem:[%s4 + $0x10] sm:$0xff] %vm341, %v311
  %345 = vst.msk [vmem:[%s4 + $0x18] sm:$0xff] %vm341, %v312
  %346 = vst.msk [vmem:[%s4 + $0x20] sm:$0xff] %vm341, %v313
  %347 = vst.msk [vmem:[%s4 + $0x28] sm:$0xff] %vm341, %v314
  %348 = vst.msk [vmem:[%s4 + $0x30] sm:$0xff] %vm341, %v315
  %349 = vst.msk [vmem:[%s4 + $0x38] sm:$0xff] %vm341, %v316
  %350 = vst.msk [vmem:[%s4 + $0x40] sm:$0xff] %vm341, %v317
  %351 = vst.msk [vmem:[%s4 + $0x48] sm:$0xff] %vm341, %v318
  %352 = vst.msk [vmem:[%s4 + $0x50] sm:$0xff] %vm341, %v319
  %353 = vst.msk [vmem:[%s4 + $0x58] sm:$0xff] %vm341, %v320
  %354 = vst.msk [vmem:[%s4 + $0x60] sm:$0xff] %vm341, %v321
  %355 = vst.msk [vmem:[%s4 + $0x68] sm:$0xff] %vm341, %v322
  %356 = vst.msk [vmem:[%s4 + $0x70] sm:$0xff] %vm341, %v323
  %357 = vst.msk [vmem:[%s4 + $0x78] sm:$0xff] %vm341, %v324
  %358 = vst.msk [vmem:[%s4 + $0x80] sm:$0xff] %vm341, %v325
  %359 = vst.msk [vmem:[%s4 + $0x88] sm:$0xff] %vm341, %v326
  %360 = vst.msk [vmem:[%s4 + $0x90] sm:$0xff] %vm341, %v327
  %361 = vst.msk [vmem:[%s4 + $0x98] sm:$0xff] %vm341, %v328
  %362 = vst.msk [vmem:[%s4 + $0xa0] sm:$0xff] %vm341, %v329
  %363 = vst.msk [vmem:[%s4 + $0xa8] sm:$0xff] %vm341, %v330
  %364 = vst.msk [vmem:[%s4 + $0xb0] sm:$0xff] %vm341, %v331
  %365 = vst.msk [vmem:[%s4 + $0xb8] sm:$0xff] %vm341, %v332
  %366 = vst.msk [vmem:[%s4 + $0xc0] sm:$0xff] %vm341, %v333
  %367 = vst.msk [vmem:[%s4 + $0xc8] sm:$0xff] %vm341, %v334
  %368 = vst.msk [vmem:[%s4 + $0xd0] sm:$0xff] %vm341, %v335
  %369 = vst.msk [vmem:[%s4 + $0xd8] sm:$0xff] %vm341, %v336
  %370 = vst.msk [vmem:[%s4 + $0xe0] sm:$0xff] %vm341, %v337
  %371 = vst.msk [vmem:[%s4 + $0xe8] sm:$0xff] %vm341, %v338
  %372 = vst.msk [vmem:[%s4 + $0xf0] sm:$0xff] %vm341, %v339
  %373 = vst.msk [vmem:[%s4 + $0xf8] sm:$0xff] %vm341, %v340
  // Predicated region
  $region18: #{psgm_forward.9} parent=0 // pred_check
    _
  $region19: #{psgm_forward.9} parent=0 // pred_check_branch
    %375 = sbr.rel (0) target = $region21
  $region20: #{psgm_forward.9} parent=0 // pred_region
    _
  $region21: #{psgm_forward.9} parent=0 // pred_fallthru
    _
  // Predicated region
  $region22: #{psgm_forward.9} parent=0 // pred_check
    _
  $region23: #{psgm_forward.9} parent=0 // pred_check_branch
    %377 = sbr.rel (0) target = $region25
  $region24: #{psgm_forward.9} parent=0 // pred_region
    _
  $region25: #{psgm_forward.9} parent=0 // pred_fallthru
    _

</llo_original>
